<compile_context>
chip_gen: v7x
topology: tpu7x:2x2x1
jax: 0.10.0
libtpu: 0.0.40
codegen_flags: <defaults>
</compile_context>

<pallas_src>
import functools
import math

import jax
import jax.numpy as jnp
from jax.experimental import pallas as pl
from jax.experimental.pallas import tpu as pltpu

# ----------------------------- small config ---------------------------------
VOCAB = 512
HIDDEN = 128
N_HEADS = 4
N_KV_HEADS = 2
HEAD_DIM = HIDDEN // N_HEADS          # 32
INTERMEDIATE = 256
N_LAYERS = 2
RMS_EPS = 1e-6
ROPE_THETA = 1.0e6
DTYPE = jnp.float32                    # activation dtype in HBM
WEIGHT_DTYPE = jnp.bfloat16            # matmul weights / embedding in HBM
MATMUL_DTYPE = jnp.bfloat16            # dot-input dtype (f32 accumulation)


# ----------------------------- in-kernel helpers -----------------------------
def _rmsnorm_f32(x, w, eps):
    ms = jnp.mean(x * x, axis=-1, keepdims=True)
    return x * jax.lax.rsqrt(ms + eps) * w


def _dot_nn(a_f32, w_bf16):
    # a @ W with bf16 inputs, f32 accumulation on the MXU (weights already bf16).
    return jax.lax.dot_general(
        a_f32.astype(MATMUL_DTYPE), w_bf16,
        dimension_numbers=(((1,), (0,)), ((), ())),
        preferred_element_type=jnp.float32)


def _dot_nt(a_f32, w_bf16):
    # a @ W.T (transposed operand handled natively by the MXU).
    return jax.lax.dot_general(
        a_f32.astype(MATMUL_DTYPE), w_bf16,
        dimension_numbers=(((1,), (1,)), ((), ())),
        preferred_element_type=jnp.float32)


# ----------------------------- fused stack kernel ----------------------------
def _stack_kernel(h0_ref, ln1_ref, wqkv_ref, bqkv_ref, cos_ref, sin_ref,
                  wo_ref, ln2_ref, wgu_ref, wd_ref, lnf_ref, emb_ref,
                  out_ref, h_scr,
                  *, eps, n_heads, n_kv_heads, head_dim, inter, scale):
    """One grid step = (one batch row-block) x (one transformer layer)."""
    layer = pl.program_id(1)
    S = h0_ref.shape[0]
    H, Hkv, Dh = n_heads, n_kv_heads, head_dim
    d2 = Dh // 2
    n_rep = H // Hkv

    # Load the embedding activations into the resident VMEM carry at layer 0.
    @pl.when(layer == 0)
    def _():
        h_scr[...] = h0_ref[...].astype(jnp.float32)

    h = h_scr[...]                                                    # [S, D] f32

    # -------------------- attention sub-block --------------------------------
    xn = _rmsnorm_f32(h, ln1_ref[...].astype(jnp.float32), eps)       # input_layernorm
    # fused Q|K|V projection (+bias): one MXU pass over [D, (H+2*Hkv)*Dh]
    qkv = _dot_nn(xn, wqkv_ref[...]) + bqkv_ref[...].astype(jnp.float32)

    q_all = qkv[:, :H * Dh]                                           # [S, H*Dh]
    k_all = qkv[:, H * Dh:(H + Hkv) * Dh]                             # [S, Hkv*Dh]
    v_all = qkv[:, (H + Hkv) * Dh:]                                   # [S, Hkv*Dh]

    # head-major stacks (leading head axis) so RoPE / attention are batched once
    q_hm = jnp.stack([q_all[:, i * Dh:(i + 1) * Dh] for i in range(H)], axis=0)
    k_hm = jnp.stack([k_all[:, g * Dh:(g + 1) * Dh] for g in range(Hkv)], axis=0)
    v_hm = jnp.stack([v_all[:, g * Dh:(g + 1) * Dh] for g in range(Hkv)], axis=0)

    cos = cos_ref[...].astype(jnp.float32)[None]                      # [1, S, Dh]
    sin = sin_ref[...].astype(jnp.float32)[None]

    def rope(t):                                                      # t: [n, S, Dh]
        t_rot = jnp.concatenate([-t[..., d2:], t[..., :d2]], axis=-1)  # rotate_half
        return t * cos + t_rot * sin

    q_hm = rope(q_hm) * scale                                         # fold 1/sqrt(Dh) into q
    k_hm = rope(k_hm)

    # GQA: repeat each KV head n_rep times along the (leading) head axis.
    k_rep = jnp.broadcast_to(k_hm[:, None], (Hkv, n_rep, S, Dh)).reshape(H, S, Dh)
    v_rep = jnp.broadcast_to(v_hm[:, None], (Hkv, n_rep, S, Dh)).reshape(H, S, Dh)

    row = jax.lax.broadcasted_iota(jnp.int32, (S, S), 0)
    col = jax.lax.broadcasted_iota(jnp.int32, (S, S), 1)
    causal = (col <= row)[None]                                       # [1, S, S]

    # batched scores / softmax / PV over all heads (f32 softmax math)
    s = jnp.einsum('hqd,hkd->hqk',
                   q_hm.astype(MATMUL_DTYPE), k_rep.astype(MATMUL_DTYPE),
                   preferred_element_type=jnp.float32)                # [H, S, S]
    s = jnp.where(causal, s, -1e30)
    m = jnp.max(s, axis=-1, keepdims=True)
    p = jnp.exp(s - m)
    p = p / jnp.sum(p, axis=-1, keepdims=True)                        # exact division
    o = jnp.einsum('hqk,hkd->hqd',
                   p.astype(MATMUL_DTYPE), v_rep.astype(MATMUL_DTYPE),
                   preferred_element_type=jnp.float32)                # [H, S, Dh]
    attn = jnp.concatenate([o[i] for i in range(H)], axis=-1)         # [S, H*Dh] lane-dense

    h = h + _dot_nn(attn, wo_ref[...])                                # o_proj + residual

    # -------------------- MLP sub-block --------------------------------------
    xn2 = _rmsnorm_f32(h, ln2_ref[...].astype(jnp.float32), eps)      # post_attention_layernorm
    gu = _dot_nn(xn2, wgu_ref[...])                                   # fused gate|up [S, 2I]
    g = gu[:, :inter]
    u = gu[:, inter:]
    h = h + _dot_nn(g * jax.nn.sigmoid(g) * u, wd_ref[...])           # SiLU(gate)*up -> down + residual

    h_scr[...] = h                                                    # carry to next layer

    # -------------------- final norm + tied-embedding logits -----------------
    @pl.when(layer == pl.num_programs(1) - 1)
    def _():
        xf = _rmsnorm_f32(h, lnf_ref[...].astype(jnp.float32), eps)
        out_ref[...] = _dot_nt(xf, emb_ref[...]).astype(out_ref.dtype)  # x @ E.T


# ----------------------------- pallas_call wrapper ---------------------------
def qwen_stack_forward(h0, params, cos, sin):
    B, S, D = h0.shape
    L = params["wqkv"].shape[0]
    qkv_n = params["wqkv"].shape[2]
    HDh = params["wo"].shape[1]
    I = params["wd"].shape[1]
    V = params["embed"].shape[0]

    kernel = functools.partial(
        _stack_kernel, eps=RMS_EPS, n_heads=N_HEADS, n_kv_heads=N_KV_HEADS,
        head_dim=HEAD_DIM, inter=I, scale=1.0 / math.sqrt(HEAD_DIM))

    return pl.pallas_call(
        kernel,
        grid=(B, L),
        in_specs=[
            pl.BlockSpec((None, S, D), lambda b, l: (b, 0, 0)),        # h0 (embeddings)
            pl.BlockSpec((None, 1, D), lambda b, l: (l, 0, 0)),        # ln1_w  [L,1,D]
            pl.BlockSpec((None, D, qkv_n), lambda b, l: (l, 0, 0)),    # wqkv   [L,D,(H+2Hkv)Dh]
            pl.BlockSpec((None, 1, qkv_n), lambda b, l: (l, 0, 0)),    # bqkv   [L,1,(H+2Hkv)Dh]
            pl.BlockSpec((S, HEAD_DIM), lambda b, l: (0, 0)),          # cos    [S,Dh]
            pl.BlockSpec((S, HEAD_DIM), lambda b, l: (0, 0)),          # sin    [S,Dh]
            pl.BlockSpec((None, HDh, D), lambda b, l: (l, 0, 0)),      # wo     [L,H*Dh,D]
            pl.BlockSpec((None, 1, D), lambda b, l: (l, 0, 0)),        # ln2_w  [L,1,D]
            pl.BlockSpec((None, D, 2 * I), lambda b, l: (l, 0, 0)),    # wgu    [L,D,2I]
            pl.BlockSpec((None, I, D), lambda b, l: (l, 0, 0)),        # wd     [L,I,D]
            pl.BlockSpec((1, D), lambda b, l: (0, 0)),                 # final norm [1,D]
            pl.BlockSpec((V, D), lambda b, l: (0, 0)),                 # tied embed [V,D]
        ],
        out_specs=pl.BlockSpec((None, S, V), lambda b, l: (b, 0, 0)),
        out_shape=jax.ShapeDtypeStruct((B, S, V), DTYPE),
        scratch_shapes=[pltpu.VMEM((S, D), jnp.float32)],              # resident hidden state
        compiler_params=pltpu.CompilerParams(
            dimension_semantics=("parallel", "arbitrary")),
    )(h0, params["ln1_w"], params["wqkv"], params["bqkv"], cos, sin,
      params["wo"], params["ln2_w"], params["wgu"], params["wd"],
      params["norm_w"], params["embed"])


# ----------------------------- model glue ------------------------------------
def rotary_tables(S, dim, theta):
    # Matches Qwen2RotaryEmbedding: inv_freq = 1/theta^(arange(0,dim,2)/dim),
    # emb = cat(freqs, freqs); same positions for every batch row.
    inv_freq = 1.0 / (theta ** (jnp.arange(0, dim, 2, dtype=jnp.float32) / dim))
    pos = jnp.arange(S, dtype=jnp.float32)
    freqs = pos[:, None] * inv_freq[None, :]                          # [S, dim/2]
    emb = jnp.concatenate([freqs, freqs], axis=-1)                    # [S, dim]
    return jnp.cos(emb), jnp.sin(emb)


def transformer_forward(params, tokens):
    # TODO(synk): vision encoder / multimodal path not exercised (vision_config=None)
    # and KV-cache inference path not implemented; the token-embedding gather stays
    # in plain JAX glue.
    B, S = tokens.shape
    h0 = jnp.take(params["embed"], tokens, axis=0).astype(DTYPE)      # [B, S, D]
    cos, sin = rotary_tables(S, HEAD_DIM, ROPE_THETA)
    return qwen_stack_forward(h0, params, cos, sin)                   # [B, S, V]


# ----------------------------- parameter init -------------------------------
def init_params(key):
    D, H, Hkv, Dh = HIDDEN, N_HEADS, N_KV_HEADS, HEAD_DIM
    I, L, V = INTERMEDIATE, N_LAYERS, VOCAB
    qkv_n = (H + 2 * Hkv) * Dh

    def nrm(k, shape, dtype, scale=0.02):
        return (scale * jax.random.normal(k, shape, dtype=jnp.float32)).astype(dtype)

    k_emb, k_qkv, k_bq, k_wo, k_gu, k_wd = jax.random.split(key, 6)
    return {
        "embed":  nrm(k_emb, (V, D), WEIGHT_DTYPE),                   # tied word embeddings
        "norm_w": jnp.ones((1, D), jnp.float32),                      # final RMSNorm
        "ln1_w":  jnp.ones((L, 1, D), jnp.float32),                   # input_layernorm
        "ln2_w":  jnp.ones((L, 1, D), jnp.float32),                   # post_attention_layernorm
        "wqkv":   nrm(k_qkv, (L, D, qkv_n), WEIGHT_DTYPE),            # wq|wk|wv fused along N
        "bqkv":   nrm(k_bq,  (L, 1, qkv_n), jnp.float32),             # bq|bk|bv fused
        "wo":     nrm(k_wo,  (L, H * Dh, D), WEIGHT_DTYPE),           # o_proj (no bias)
        "wgu":    nrm(k_gu,  (L, D, 2 * I), WEIGHT_DTYPE),            # gate|up fused along N
        "wd":     nrm(k_wd,  (L, I, D), WEIGHT_DTYPE),                # down_proj
    }


# ----------------------------- main ------------------------------------------
if __name__ == "__main__":
    key = jax.random.PRNGKey(0)
    pkey, tkey = jax.random.split(key)
    params = init_params(pkey)

    B, S = 2, 8
    tokens = jax.random.randint(tkey, (B, S), 0, VOCAB, dtype=jnp.int32)

    fwd = jax.jit(transformer_forward)
    logits = fwd(params, tokens)
    jax.block_until_ready(logits)
    assert logits.shape == (B, S, VOCAB)
    assert bool(jnp.all(jnp.isfinite(logits)))
    print("KERNEL_OK")
</pallas_src>

<mosaic_0001>
module attributes {stable_mosaic.version = 11 : i64} {
  func.func @_stack_kernel(%arg0: i32, %arg1: i32, %arg2: memref<1x8x128xf32, #tpu.memory_space<vmem>>, %arg3: memref<1x1x128xf32, #tpu.memory_space<vmem>>, %arg4: memref<1x128x256xbf16, #tpu.memory_space<vmem>>, %arg5: memref<1x1x256xf32, #tpu.memory_space<vmem>>, %arg6: memref<8x32xf32, #tpu.memory_space<vmem>>, %arg7: memref<8x32xf32, #tpu.memory_space<vmem>>, %arg8: memref<1x128x128xbf16, #tpu.memory_space<vmem>>, %arg9: memref<1x1x128xf32, #tpu.memory_space<vmem>>, %arg10: memref<1x128x512xbf16, #tpu.memory_space<vmem>>, %arg11: memref<1x256x128xbf16, #tpu.memory_space<vmem>>, %arg12: memref<1x128xf32, #tpu.memory_space<vmem>>, %arg13: memref<512x128xbf16, #tpu.memory_space<vmem>>, %arg14: memref<1x8x512xf32, #tpu.memory_space<vmem>>, %arg15: memref<8x128xf32, #tpu.memory_space<vmem>>) attributes {dimension_semantics = [#tpu.dimension_semantics<parallel>, #tpu.dimension_semantics<arbitrary>], iteration_bounds = array<i64: 2, 2>, scalar_prefetch = 0 : i64, scratch_operands = 1 : i64, tpu.core_type = #tpu.core_type<tc>, window_params = [{transform_indices = @transform_0, window_bounds = array<i64: 1, 8, 128>}, {transform_indices = @transform_1, window_bounds = array<i64: 1, 1, 128>}, {transform_indices = @transform_2, window_bounds = array<i64: 1, 128, 256>}, {transform_indices = @transform_3, window_bounds = array<i64: 1, 1, 256>}, {pipeline_mode = #tpu.pipeline_mode<synchronous>, transform_indices = @transform_4, window_bounds = array<i64: 8, 32>}, {pipeline_mode = #tpu.pipeline_mode<synchronous>, transform_indices = @transform_5, window_bounds = array<i64: 8, 32>}, {transform_indices = @transform_6, window_bounds = array<i64: 1, 128, 128>}, {transform_indices = @transform_7, window_bounds = array<i64: 1, 1, 128>}, {transform_indices = @transform_8, window_bounds = array<i64: 1, 128, 512>}, {transform_indices = @transform_9, window_bounds = array<i64: 1, 256, 128>}, {pipeline_mode = #tpu.pipeline_mode<synchronous>, transform_indices = @transform_10, window_bounds = array<i64: 1, 128>}, {pipeline_mode = #tpu.pipeline_mode<synchronous>, transform_indices = @transform_11, window_bounds = array<i64: 512, 128>}, {transform_indices = @transform_12, window_bounds = array<i64: 1, 8, 512>}]} {
    %c0_i32 = arith.constant 0 : i32
    %0 = arith.cmpi eq, %arg1, %c0_i32 : i32
    %1 = arith.extui %0 : i1 to i32
    %c0_i32_0 = arith.constant 0 : i32
    %2 = arith.cmpi ne, %1, %c0_i32_0 : i32
    scf.if %2 {
      %c0_48 = arith.constant 0 : index
      %c0_49 = arith.constant 0 : index
      %c0_50 = arith.constant 0 : index
      %155 = vector.load %arg2[%c0_48, %c0_49, %c0_50] : memref<1x8x128xf32, #tpu.memory_space<vmem>>, vector<1x8x128xf32>
      %156 = vector.shape_cast %155 : vector<1x8x128xf32> to vector<8x128xf32>
      %c0_51 = arith.constant 0 : index
      %c0_52 = arith.constant 0 : index
      %157 = vector.load %arg15[%c0_51, %c0_52] : memref<8x128xf32, #tpu.memory_space<vmem>>, vector<8x128xf32>
      tpu.vector_store %arg15[%c0_51, %c0_52], %156 {strides = array<i32>} : memref<8x128xf32, #tpu.memory_space<vmem>>, vector<8x128xf32>,
    } else {
    }
    %c0 = arith.constant 0 : index
    %c0_1 = arith.constant 0 : index
    %3 = vector.load %arg15[%c0, %c0_1] : memref<8x128xf32, #tpu.memory_space<vmem>>, vector<8x128xf32>
    %c0_2 = arith.constant 0 : index
    %c0_3 = arith.constant 0 : index
    %c0_4 = arith.constant 0 : index
    %4 = vector.load %arg3[%c0_2, %c0_3, %c0_4] : memref<1x1x128xf32, #tpu.memory_space<vmem>>, vector<1x1x128xf32>
    %5 = vector.shape_cast %4 : vector<1x1x128xf32> to vector<1x128xf32>
    %6 = arith.mulf %3, %3 : vector<8x128xf32>
    %cst = arith.constant dense<0.000000e+00> : vector<8xf32>
    %7 = vector.multi_reduction <add>, %6, %cst [1] : vector<8x128xf32> to vector<8xf32>
    %8 = vector.shape_cast %7 : vector<8xf32> to vector<8x1xf32>
    %cst_5 = arith.constant 1.280000e+02 : f32
    %9 = vector.broadcast %cst_5 : f32 to vector<8x1xf32>
    %10 = arith.divf %8, %9 : vector<8x1xf32>
    %cst_6 = arith.constant 9.99999997E-7 : f32
    %11 = vector.broadcast %cst_6 : f32 to vector<8x1xf32>
    %12 = arith.addf %10, %11 : vector<8x1xf32>
    %13 = math.rsqrt %12 : vector<8x1xf32>
    %14 = vector.broadcast %13 : vector<8x1xf32> to vector<8x128xf32>
    %15 = arith.mulf %3, %14 : vector<8x128xf32>
    %16 = vector.broadcast %5 : vector<1x128xf32> to vector<8x128xf32>
    %17 = arith.mulf %15, %16 : vector<8x128xf32>
    %c0_7 = arith.constant 0 : index
    %c0_8 = arith.constant 0 : index
    %c0_9 = arith.constant 0 : index
    %18 = vector.load %arg4[%c0_7, %c0_8, %c0_9] : memref<1x128x256xbf16, #tpu.memory_space<vmem>>, vector<1x128x256xbf16>
    %19 = vector.shape_cast %18 : vector<1x128x256xbf16> to vector<128x256xbf16>
    %20 = arith.truncf %17 : vector<8x128xf32> to vector<8x128xbf16>
    %cst_10 = arith.constant dense<0.000000e+00> : vector<8x256xf32>
    %21 = tpu.matmul %20, %19, %cst_10 {dimension_numbers = #tpu.dot_dimension_numbers<[1], [0], [0], [1], [0, 0, 1, 1], [], []>} : vector<8x128xbf16>, vector<128x256xbf16>, vector<8x256xf32> -> vector<8x256xf32>
    %c0_11 = arith.constant 0 : index
    %c0_12 = arith.constant 0 : index
    %c0_13 = arith.constant 0 : index
    %22 = vector.load %arg5[%c0_11, %c0_12, %c0_13] : memref<1x1x256xf32, #tpu.memory_space<vmem>>, vector<1x1x256xf32>
    %23 = vector.shape_cast %22 : vector<1x1x256xf32> to vector<1x256xf32>
    %24 = vector.broadcast %23 : vector<1x256xf32> to vector<8x256xf32>
    %25 = arith.addf %21, %24 : vector<8x256xf32>
    %26 = vector.extract_strided_slice %25 {offsets = [0, 0], sizes = [8, 128], strides = [1, 1]} : vector<8x256xf32> to vector<8x128xf32>
    %27 = vector.extract_strided_slice %25 {offsets = [0, 128], sizes = [8, 64], strides = [1, 1]} : vector<8x256xf32> to vector<8x64xf32>
    %28 = vector.extract_strided_slice %25 {offsets = [0, 192], sizes = [8, 64], strides = [1, 1]} : vector<8x256xf32> to vector<8x64xf32>
    %29 = vector.extract_strided_slice %26 {offsets = [0, 0], sizes = [8, 32], strides = [1, 1]} : vector<8x128xf32> to vector<8x32xf32>
    %30 = vector.extract_strided_slice %26 {offsets = [0, 32], sizes = [8, 32], strides = [1, 1]} : vector<8x128xf32> to vector<8x32xf32>
    %31 = vector.extract_strided_slice %26 {offsets = [0, 64], sizes = [8, 32], strides = [1, 1]} : vector<8x128xf32> to vector<8x32xf32>
    %32 = vector.extract_strided_slice %26 {offsets = [0, 96], sizes = [8, 32], strides = [1, 1]} : vector<8x128xf32> to vector<8x32xf32>
    %33 = vector.shape_cast %29 : vector<8x32xf32> to vector<1x8x32xf32>
    %34 = vector.shape_cast %30 : vector<8x32xf32> to vector<1x8x32xf32>
    %35 = vector.shape_cast %31 : vector<8x32xf32> to vector<1x8x32xf32>
    %36 = vector.shape_cast %32 : vector<8x32xf32> to vector<1x8x32xf32>
    %37 = tpu.concatenate %33, %34, %35, %36 in 0 : vector<1x8x32xf32>, vector<1x8x32xf32>, vector<1x8x32xf32>, vector<1x8x32xf32> -> vector<4x8x32xf32>
    %38 = vector.extract_strided_slice %27 {offsets = [0, 0], sizes = [8, 32], strides = [1, 1]} : vector<8x64xf32> to vector<8x32xf32>
    %39 = vector.extract_strided_slice %27 {offsets = [0, 32], sizes = [8, 32], strides = [1, 1]} : vector<8x64xf32> to vector<8x32xf32>
    %40 = vector.shape_cast %38 : vector<8x32xf32> to vector<1x8x32xf32>
    %41 = vector.shape_cast %39 : vector<8x32xf32> to vector<1x8x32xf32>
    %42 = tpu.concatenate %40, %41 in 0 : vector<1x8x32xf32>, vector<1x8x32xf32> -> vector<2x8x32xf32>
    %43 = vector.extract_strided_slice %28 {offsets = [0, 0], sizes = [8, 32], strides = [1, 1]} : vector<8x64xf32> to vector<8x32xf32>
    %44 = vector.extract_strided_slice %28 {offsets = [0, 32], sizes = [8, 32], strides = [1, 1]} : vector<8x64xf32> to vector<8x32xf32>
    %45 = vector.shape_cast %43 : vector<8x32xf32> to vector<1x8x32xf32>
    %46 = vector.shape_cast %44 : vector<8x32xf32> to vector<1x8x32xf32>
    %47 = tpu.concatenate %45, %46 in 0 : vector<1x8x32xf32>, vector<1x8x32xf32> -> vector<2x8x32xf32>
    %c0_14 = arith.constant 0 : index
    %c0_15 = arith.constant 0 : index
    %48 = vector.load %arg6[%c0_14, %c0_15] : memref<8x32xf32, #tpu.memory_space<vmem>>, vector<8x32xf32>
    %49 = vector.shape_cast %48 : vector<8x32xf32> to vector<1x8x32xf32>
    %c0_16 = arith.constant 0 : index
    %c0_17 = arith.constant 0 : index
    %50 = vector.load %arg7[%c0_16, %c0_17] : memref<8x32xf32, #tpu.memory_space<vmem>>, vector<8x32xf32>
    %51 = vector.shape_cast %50 : vector<8x32xf32> to vector<1x8x32xf32>
    %52 = vector.extract_strided_slice %37 {offsets = [0, 0, 16], sizes = [4, 8, 16], strides = [1, 1, 1]} : vector<4x8x32xf32> to vector<4x8x16xf32>
    %cst_18 = arith.constant 0.000000e+00 : f32
    %53 = vector.broadcast %cst_18 : f32 to vector<4x8x16xf32>
    %54 = arith.subf %53, %52 : vector<4x8x16xf32>
    %55 = vector.extract_strided_slice %37 {offsets = [0, 0, 0], sizes = [4, 8, 16], strides = [1, 1, 1]} : vector<4x8x32xf32> to vector<4x8x16xf32>
    %56 = tpu.concatenate %54, %55 in 2 : vector<4x8x16xf32>, vector<4x8x16xf32> -> vector<4x8x32xf32>
    %57 = vector.broadcast %49 : vector<1x8x32xf32> to vector<4x8x32xf32>
    %58 = arith.mulf %37, %57 : vector<4x8x32xf32>
    %59 = vector.broadcast %51 : vector<1x8x32xf32> to vector<4x8x32xf32>
    %60 = arith.mulf %56, %59 : vector<4x8x32xf32>
    %61 = arith.addf %58, %60 : vector<4x8x32xf32>
    %cst_19 = arith.constant 0.176776692 : f32
    %62 = vector.broadcast %cst_19 : f32 to vector<4x8x32xf32>
    %63 = arith.mulf %61, %62 : vector<4x8x32xf32>
    %64 = vector.extract_strided_slice %42 {offsets = [0, 0, 16], sizes = [2, 8, 16], strides = [1, 1, 1]} : vector<2x8x32xf32> to vector<2x8x16xf32>
    %cst_20 = arith.constant 0.000000e+00 : f32
    %65 = vector.broadcast %cst_20 : f32 to vector<2x8x16xf32>
    %66 = arith.subf %65, %64 : vector<2x8x16xf32>
    %67 = vector.extract_strided_slice %42 {offsets = [0, 0, 0], sizes = [2, 8, 16], strides = [1, 1, 1]} : vector<2x8x32xf32> to vector<2x8x16xf32>
    %68 = tpu.concatenate %66, %67 in 2 : vector<2x8x16xf32>, vector<2x8x16xf32> -> vector<2x8x32xf32>
    %69 = vector.broadcast %49 : vector<1x8x32xf32> to vector<2x8x32xf32>
    %70 = arith.mulf %42, %69 : vector<2x8x32xf32>
    %71 = vector.broadcast %51 : vector<1x8x32xf32> to vector<2x8x32xf32>
    %72 = arith.mulf %68, %71 : vector<2x8x32xf32>
    %73 = arith.addf %70, %72 : vector<2x8x32xf32>
    %74 = vector.shape_cast %73 : vector<2x8x32xf32> to vector<2x1x8x32xf32>
    %75 = vector.shape_cast %74 : vector<2x1x8x32xf32> to vector<2x1x8x32xf32>
    %76 = vector.broadcast %75 : vector<2x1x8x32xf32> to vector<2x2x8x32xf32>
    %77 = vector.shape_cast %76 : vector<2x2x8x32xf32> to vector<4x8x32xf32>
    %78 = vector.shape_cast %47 : vector<2x8x32xf32> to vector<2x1x8x32xf32>
    %79 = vector.shape_cast %78 : vector<2x1x8x32xf32> to vector<2x1x8x32xf32>
    %80 = vector.broadcast %79 : vector<2x1x8x32xf32> to vector<2x2x8x32xf32>
    %81 = vector.shape_cast %80 : vector<2x2x8x32xf32> to vector<4x8x32xf32>
    %82 = tpu.iota {dimensions = array<i32: 0>} : vector<8x8xi32>
    %83 = tpu.iota {dimensions = array<i32: 1>} : vector<8x8xi32>
    %84 = arith.cmpi sle, %83, %82 : vector<8x8xi32>
    %85 = vector.shape_cast %84 : vector<8x8xi1> to vector<1x8x8xi1>
    %86 = arith.truncf %63 : vector<4x8x32xf32> to vector<4x8x32xbf16>
    %87 = arith.truncf %77 : vector<4x8x32xf32> to vector<4x8x32xbf16>
    "tpu.trace_start"() <{level = 10 : i32, message = "hqd,hkd->hqk"}> : () -> ()
    %cst_21 = arith.constant dense<0.000000e+00> : vector<4x8x8xf32>
    %88 = tpu.matmul %86, %87, %cst_21 {dimension_numbers = #tpu.dot_dimension_numbers<[2], [2], [1], [1], [0, 0, 0, 1, 1, 1], [0], [0]>} : vector<4x8x32xbf16>, vector<4x8x32xbf16>, vector<4x8x8xf32> -> vector<4x8x8xf32>
    %cst_22 = arith.constant -1.000000e+30 : f32
    "tpu.trace_stop"() : () -> ()
    %89 = vector.shape_cast %85 : vector<1x8x8xi1> to vector<1x8x8xi1>
    %90 = vector.broadcast %89 : vector<1x8x8xi1> to vector<4x8x8xi1>
    %91 = vector.broadcast %cst_22 : f32 to vector<4x8x8xf32>
    %92 = arith.select %90, %88, %91 : vector<4x8x8xi1>, vector<4x8x8xf32>
    %cst_23 = arith.constant dense<0xFF800000> : vector<4x8xf32>
    %93 = vector.multi_reduction <maximumf>, %92, %cst_23 [2] : vector<4x8x8xf32> to vector<4x8xf32>
    %94 = vector.shape_cast %93 : vector<4x8xf32> to vector<4x8x1xf32>
    %95 = vector.broadcast %94 : vector<4x8x1xf32> to vector<4x8x8xf32>
    %96 = arith.subf %92, %95 : vector<4x8x8xf32>
    %97 = math.exp %96 : vector<4x8x8xf32>
    %cst_24 = arith.constant dense<0.000000e+00> : vector<4x8xf32>
    %98 = vector.multi_reduction <add>, %97, %cst_24 [2] : vector<4x8x8xf32> to vector<4x8xf32>
    %99 = vector.shape_cast %98 : vector<4x8xf32> to vector<4x8x1xf32>
    %100 = vector.broadcast %99 : vector<4x8x1xf32> to vector<4x8x8xf32>
    %101 = arith.divf %97, %100 : vector<4x8x8xf32>
    %102 = arith.truncf %101 : vector<4x8x8xf32> to vector<4x8x8xbf16>
    %103 = arith.truncf %81 : vector<4x8x32xf32> to vector<4x8x32xbf16>
    "tpu.trace_start"() <{level = 10 : i32, message = "hqk,hkd->hqd"}> : () -> ()
    %cst_25 = arith.constant dense<0.000000e+00> : vector<4x8x32xf32>
    %104 = tpu.matmul %102, %103, %cst_25 {dimension_numbers = #tpu.dot_dimension_numbers<[2], [1], [1], [2], [0, 0, 0, 1, 1, 2], [0], [0]>} : vector<4x8x8xbf16>, vector<4x8x32xbf16>, vector<4x8x32xf32> -> vector<4x8x32xf32>
    "tpu.trace_stop"() : () -> ()
    %105 = vector.extract_strided_slice %104 {offsets = [0, 0, 0], sizes = [1, 8, 32], strides = [1, 1, 1]} : vector<4x8x32xf32> to vector<1x8x32xf32>
    %106 = vector.shape_cast %105 : vector<1x8x32xf32> to vector<8x32xf32>
    %107 = vector.extract_strided_slice %104 {offsets = [1, 0, 0], sizes = [1, 8, 32], strides = [1, 1, 1]} : vector<4x8x32xf32> to vector<1x8x32xf32>
    %108 = vector.shape_cast %107 : vector<1x8x32xf32> to vector<8x32xf32>
    %109 = vector.extract_strided_slice %104 {offsets = [2, 0, 0], sizes = [1, 8, 32], strides = [1, 1, 1]} : vector<4x8x32xf32> to vector<1x8x32xf32>
    %110 = vector.shape_cast %109 : vector<1x8x32xf32> to vector<8x32xf32>
    %111 = vector.extract_strided_slice %104 {offsets = [3, 0, 0], sizes = [1, 8, 32], strides = [1, 1, 1]} : vector<4x8x32xf32> to vector<1x8x32xf32>
    %112 = vector.shape_cast %111 : vector<1x8x32xf32> to vector<8x32xf32>
    %113 = tpu.concatenate %106, %108, %110, %112 in 1 : vector<8x32xf32>, vector<8x32xf32>, vector<8x32xf32>, vector<8x32xf32> -> vector<8x128xf32>
    %c0_26 = arith.constant 0 : index
    %c0_27 = arith.constant 0 : index
    %c0_28 = arith.constant 0 : index
    %114 = vector.load %arg8[%c0_26, %c0_27, %c0_28] : memref<1x128x128xbf16, #tpu.memory_space<vmem>>, vector<1x128x128xbf16>
    %115 = vector.shape_cast %114 : vector<1x128x128xbf16> to vector<128x128xbf16>
    %116 = arith.truncf %113 : vector<8x128xf32> to vector<8x128xbf16>
    %cst_29 = arith.constant dense<0.000000e+00> : vector<8x128xf32>
    %117 = tpu.matmul %116, %115, %cst_29 {dimension_numbers = #tpu.dot_dimension_numbers<[1], [0], [0], [1], [0, 0, 1, 1], [], []>} : vector<8x128xbf16>, vector<128x128xbf16>, vector<8x128xf32> -> vector<8x128xf32>
    %118 = arith.addf %3, %117 : vector<8x128xf32>
    %c0_30 = arith.constant 0 : index
    %c0_31 = arith.constant 0 : index
    %c0_32 = arith.constant 0 : index
    %119 = vector.load %arg9[%c0_30, %c0_31, %c0_32] : memref<1x1x128xf32, #tpu.memory_space<vmem>>, vector<1x1x128xf32>
    %120 = vector.shape_cast %119 : vector<1x1x128xf32> to vector<1x128xf32>
    %121 = arith.mulf %118, %118 : vector<8x128xf32>
    %cst_33 = arith.constant dense<0.000000e+00> : vector<8xf32>
    %122 = vector.multi_reduction <add>, %121, %cst_33 [1] : vector<8x128xf32> to vector<8xf32>
    %123 = vector.shape_cast %122 : vector<8xf32> to vector<8x1xf32>
    %cst_34 = arith.constant 1.280000e+02 : f32
    %124 = vector.broadcast %cst_34 : f32 to vector<8x1xf32>
    %125 = arith.divf %123, %124 : vector<8x1xf32>
    %cst_35 = arith.constant 9.99999997E-7 : f32
    %126 = vector.broadcast %cst_35 : f32 to vector<8x1xf32>
    %127 = arith.addf %125, %126 : vector<8x1xf32>
    %128 = math.rsqrt %127 : vector<8x1xf32>
    %129 = vector.broadcast %128 : vector<8x1xf32> to vector<8x128xf32>
    %130 = arith.mulf %118, %129 : vector<8x128xf32>
    %131 = vector.broadcast %120 : vector<1x128xf32> to vector<8x128xf32>
    %132 = arith.mulf %130, %131 : vector<8x128xf32>
    %c0_36 = arith.constant 0 : index
    %c0_37 = arith.constant 0 : index
    %c0_38 = arith.constant 0 : index
    %133 = vector.load %arg10[%c0_36, %c0_37, %c0_38] : memref<1x128x512xbf16, #tpu.memory_space<vmem>>, vector<1x128x512xbf16>
    %134 = vector.shape_cast %133 : vector<1x128x512xbf16> to vector<128x512xbf16>
    %135 = arith.truncf %132 : vector<8x128xf32> to vector<8x128xbf16>
    %cst_39 = arith.constant dense<0.000000e+00> : vector<8x512xf32>
    %136 = tpu.matmul %135, %134, %cst_39 {dimension_numbers = #tpu.dot_dimension_numbers<[1], [0], [0], [1], [0, 0, 1, 1], [], []>} : vector<8x128xbf16>, vector<128x512xbf16>, vector<8x512xf32> -> vector<8x512xf32>
    %137 = vector.extract_strided_slice %136 {offsets = [0, 0], sizes = [8, 256], strides = [1, 1]} : vector<8x512xf32> to vector<8x256xf32>
    %138 = vector.extract_strided_slice %136 {offsets = [0, 256], sizes = [8, 256], strides = [1, 1]} : vector<8x512xf32> to vector<8x256xf32>
    %139 = arith.negf %137 : vector<8x256xf32>
    %140 = math.exp %139 : vector<8x256xf32>
    %cst_40 = arith.constant 1.000000e+00 : f32
    %141 = vector.broadcast %cst_40 : f32 to vector<8x256xf32>
    %142 = arith.addf %141, %140 : vector<8x256xf32>
    %143 = arith.divf %141, %142 : vector<8x256xf32>
    %144 = arith.mulf %137, %143 : vector<8x256xf32>
    %145 = arith.mulf %144, %138 : vector<8x256xf32>
    %c0_41 = arith.constant 0 : index
    %c0_42 = arith.constant 0 : index
    %c0_43 = arith.constant 0 : index
    %146 = vector.load %arg11[%c0_41, %c0_42, %c0_43] : memref<1x256x128xbf16, #tpu.memory_space<vmem>>, vector<1x256x128xbf16>
    %147 = vector.shape_cast %146 : vector<1x256x128xbf16> to vector<256x128xbf16>
    %148 = arith.truncf %145 : vector<8x256xf32> to vector<8x256xbf16>
    %cst_44 = arith.constant dense<0.000000e+00> : vector<8x128xf32>
    %149 = tpu.matmul %148, %147, %cst_44 {dimension_numbers = #tpu.dot_dimension_numbers<[1], [0], [0], [1], [0, 0, 1, 1], [], []>} : vector<8x256xbf16>, vector<256x128xbf16>, vector<8x128xf32> -> vector<8x128xf32>
    %150 = arith.addf %118, %149 : vector<8x128xf32>
    %c0_45 = arith.constant 0 : index
    %c0_46 = arith.constant 0 : index
    %151 = vector.load %arg15[%c0_45, %c0_46] : memref<8x128xf32, #tpu.memory_space<vmem>>, vector<8x128xf32>
    tpu.vector_store %arg15[%c0_45, %c0_46], %150 {strides = array<i32>} : memref<8x128xf32, #tpu.memory_space<vmem>>, vector<8x128xf32>,
    %c1_i32 = arith.constant 1 : i32
    %152 = arith.cmpi eq, %arg1, %c1_i32 : i32
    %153 = arith.extui %152 : i1 to i32
    %c0_i32_47 = arith.constant 0 : i32
    %154 = arith.cmpi ne, %153, %c0_i32_47 : i32
    scf.if %154 {
      %c0_48 = arith.constant 0 : index
      %c0_49 = arith.constant 0 : index
      %155 = vector.load %arg12[%c0_48, %c0_49] : memref<1x128xf32, #tpu.memory_space<vmem>>, vector<1x128xf32>
      %156 = arith.mulf %150, %150 : vector<8x128xf32>
      %cst_50 = arith.constant dense<0.000000e+00> : vector<8xf32>
      %157 = vector.multi_reduction <add>, %156, %cst_50 [1] : vector<8x128xf32> to vector<8xf32>
      %158 = vector.shape_cast %157 : vector<8xf32> to vector<8x1xf32>
      %cst_51 = arith.constant 1.280000e+02 : f32
      %159 = vector.broadcast %cst_51 : f32 to vector<8x1xf32>
      %160 = arith.divf %158, %159 : vector<8x1xf32>
      %cst_52 = arith.constant 9.99999997E-7 : f32
      %161 = vector.broadcast %cst_52 : f32 to vector<8x1xf32>
      %162 = arith.addf %160, %161 : vector<8x1xf32>
      %163 = math.rsqrt %162 : vector<8x1xf32>
      %164 = vector.broadcast %163 : vector<8x1xf32> to vector<8x128xf32>
      %165 = arith.mulf %150, %164 : vector<8x128xf32>
      %166 = vector.broadcast %155 : vector<1x128xf32> to vector<8x128xf32>
      %167 = arith.mulf %165, %166 : vector<8x128xf32>
      %c0_53 = arith.constant 0 : index
      %c0_54 = arith.constant 0 : index
      %168 = vector.load %arg13[%c0_53, %c0_54] : memref<512x128xbf16, #tpu.memory_space<vmem>>, vector<512x128xbf16>
      %169 = arith.truncf %167 : vector<8x128xf32> to vector<8x128xbf16>
      %cst_55 = arith.constant dense<0.000000e+00> : vector<8x512xf32>
      %170 = tpu.matmul %169, %168, %cst_55 {dimension_numbers = #tpu.dot_dimension_numbers<[1], [1], [0], [0], [0, 0, 1, 0], [], []>} : vector<8x128xbf16>, vector<512x128xbf16>, vector<8x512xf32> -> vector<8x512xf32>
      %c0_56 = arith.constant 0 : index
      %c0_57 = arith.constant 0 : index
      %c0_58 = arith.constant 0 : index
      %171 = vector.load %arg14[%c0_56, %c0_57, %c0_58] : memref<1x8x512xf32, #tpu.memory_space<vmem>>, vector<1x8x512xf32>
      %172 = vector.shape_cast %171 : vector<1x8x512xf32> to vector<8x512xf32>
      %173 = vector.shape_cast %170 : vector<8x512xf32> to vector<1x8x512xf32>
      tpu.vector_store %arg14[%c0_56, %c0_57, %c0_58], %173 {strides = array<i32>} : memref<1x8x512xf32, #tpu.memory_space<vmem>>, vector<1x8x512xf32>,
    } else {
    }
    return
  }
  func.func @transform_0(%arg0: i32, %arg1: i32) -> (i32, i32, i32) {
    %c0_i32 = arith.constant 0 : i32
    %c0_i32_0 = arith.constant 0 : i32
    %c0_i32_1 = arith.constant 0 : i32
    return %arg0, %c0_i32, %c0_i32_0 : i32, i32, i32
  }
  func.func @transform_1(%arg0: i32, %arg1: i32) -> (i32, i32, i32) {
    %c0_i32 = arith.constant 0 : i32
    %c0_i32_0 = arith.constant 0 : i32
    %c0_i32_1 = arith.constant 0 : i32
    return %arg1, %c0_i32, %c0_i32_0 : i32, i32, i32
  }
  func.func @transform_2(%arg0: i32, %arg1: i32) -> (i32, i32, i32) {
    %c0_i32 = arith.constant 0 : i32
    %c0_i32_0 = arith.constant 0 : i32
    %c0_i32_1 = arith.constant 0 : i32
    return %arg1, %c0_i32, %c0_i32_0 : i32, i32, i32
  }
  func.func @transform_3(%arg0: i32, %arg1: i32) -> (i32, i32, i32) {
    %c0_i32 = arith.constant 0 : i32
    %c0_i32_0 = arith.constant 0 : i32
    %c0_i32_1 = arith.constant 0 : i32
    return %arg1, %c0_i32, %c0_i32_0 : i32, i32, i32
  }
  func.func @transform_4(%arg0: i32, %arg1: i32) -> (i32, i32) {
    %c0_i32 = arith.constant 0 : i32
    %c0_i32_0 = arith.constant 0 : i32
    %c0_i32_1 = arith.constant 0 : i32
    return %c0_i32, %c0_i32_0 : i32, i32
  }
  func.func @transform_5(%arg0: i32, %arg1: i32) -> (i32, i32) {
    %c0_i32 = arith.constant 0 : i32
    %c0_i32_0 = arith.constant 0 : i32
    %c0_i32_1 = arith.constant 0 : i32
    return %c0_i32, %c0_i32_0 : i32, i32
  }
  func.func @transform_6(%arg0: i32, %arg1: i32) -> (i32, i32, i32) {
    %c0_i32 = arith.constant 0 : i32
    %c0_i32_0 = arith.constant 0 : i32
    %c0_i32_1 = arith.constant 0 : i32
    return %arg1, %c0_i32, %c0_i32_0 : i32, i32, i32
  }
  func.func @transform_7(%arg0: i32, %arg1: i32) -> (i32, i32, i32) {
    %c0_i32 = arith.constant 0 : i32
    %c0_i32_0 = arith.constant 0 : i32
    %c0_i32_1 = arith.constant 0 : i32
    return %arg1, %c0_i32, %c0_i32_0 : i32, i32, i32
  }
  func.func @transform_8(%arg0: i32, %arg1: i32) -> (i32, i32, i32) {
    %c0_i32 = arith.constant 0 : i32
    %c0_i32_0 = arith.constant 0 : i32
    %c0_i32_1 = arith.constant 0 : i32
    return %arg1, %c0_i32, %c0_i32_0 : i32, i32, i32
  }
  func.func @transform_9(%arg0: i32, %arg1: i32) -> (i32, i32, i32) {
    %c0_i32 = arith.constant 0 : i32
    %c0_i32_0 = arith.constant 0 : i32
    %c0_i32_1 = arith.constant 0 : i32
    return %arg1, %c0_i32, %c0_i32_0 : i32, i32, i32
  }
  func.func @transform_10(%arg0: i32, %arg1: i32) -> (i32, i32) {
    %c0_i32 = arith.constant 0 : i32
    %c0_i32_0 = arith.constant 0 : i32
    %c0_i32_1 = arith.constant 0 : i32
    return %c0_i32, %c0_i32_0 : i32, i32
  }
  func.func @transform_11(%arg0: i32, %arg1: i32) -> (i32, i32) {
    %c0_i32 = arith.constant 0 : i32
    %c0_i32_0 = arith.constant 0 : i32
    %c0_i32_1 = arith.constant 0 : i32
    return %c0_i32, %c0_i32_0 : i32, i32
  }
  func.func @transform_12(%arg0: i32, %arg1: i32) -> (i32, i32, i32) {
    %c0_i32 = arith.constant 0 : i32
    %c0_i32_0 = arith.constant 0 : i32
    %c0_i32_1 = arith.constant 0 : i32
    return %arg0, %c0_i32, %c0_i32_0 : i32, i32, i32
  }
}

</mosaic_0001>

<llo_original>
// kernel: transformer_forward.1
$region0: #{transformer_forward.1}
  #allocation0 [shape = 'u32[]', space=smem, size = 0x4, offset = 0x4, fixed_abs, tag = 'smem constant byte address 0x4 - core index']
  #allocation1 [shape = 'u32[144,128]{1,0:T(1,128)}', space=vmem, size = 0x12000, scoped, tag = 'internal scratch']
  #allocation2 [shape = 'f32[8,128]{1,0:T(8,128)}', space=vmem, size = 0x1000, scoped, tag = 'scratch operand']
  %s0 = inlined_call_operand.vmem [shape: f32[2,8,128], index: 0, kind: input, shape index: {}]
  %s1 = inlined_call_operand.vmem [shape: f32[2,1,128], index: 1, kind: input, shape index: {}]
  %s2 = inlined_call_operand.hbm [shape: bf16[2,128,256], index: 2, kind: input, shape index: {}]
  %s3 = inlined_call_operand.vmem [shape: f32[2,1,256], index: 3, kind: input, shape index: {}]
  %s4 = inlined_call_operand.vmem [shape: f32[8,32], index: 4, kind: input, shape index: {}]
  %s5 = inlined_call_operand.vmem [shape: f32[8,32], index: 5, kind: input, shape index: {}]
  %s6 = inlined_call_operand.vmem [shape: bf16[2,128,128], index: 6, kind: input, shape index: {}]
  %s7 = inlined_call_operand.vmem [shape: f32[2,1,128], index: 7, kind: input, shape index: {}]
  %s8 = inlined_call_operand.hbm [shape: bf16[2,128,512], index: 8, kind: input, shape index: {}]
  %s9 = inlined_call_operand.hbm [shape: bf16[2,256,128], index: 9, kind: input, shape index: {}]
  %s10 = inlined_call_operand.vmem [shape: f32[1,128], index: 10, kind: input, shape index: {}]
  %s11 = inlined_call_operand.hbm [shape: bf16[512,128], index: 11, kind: input, shape index: {}]
  %s12 = inlined_call_operand.hbm [shape: f32[2,8,512], index: 12, kind: output, shape index: {}]
  %s13 = sld [smem:[#allocation0]]
  $region105: #{transformer_forward.1} parent=0
    _
  %s15 = ssub.s32 1, %s13
  %s16 = scalar_select 0, %s15, %s13
  $region1: #{transformer_forward.1} parent=0
    #allocation3 [shape = 'u8[131072]{0}', space=vmem, size = 0x20000, scoped, tag = 'input window, operand 2']
    #allocation4 [shape = 's32[2]{0}', space=sflag, size = 0x8, scoped, tag = 'scoped memory for transformer_forward.1']
    #allocation5 [shape = 's32[2]{0}', space=sflag, size = 0x8, scoped, tag = 'scoped memory for transformer_forward.1']
    #allocation6 [shape = 'u8[262144]{0}', space=vmem, size = 0x40000, scoped, tag = 'input window, operand 8']
    #allocation7 [shape = 's32[2]{0}', space=sflag, size = 0x8, scoped, tag = 'scoped memory for transformer_forward.1']
    #allocation8 [shape = 'u8[131072]{0}', space=vmem, size = 0x20000, scoped, tag = 'input window, operand 9']
    #allocation9 [shape = 'u8[131072]{0}', space=vmem, size = 0x20000, scoped, tag = 'input window, operand 11, single buffered']
    #allocation10 [shape = 's32[1]{0}', space=sflag, size = 0x4, scoped, tag = 'scoped memory for transformer_forward.1']
    #allocation11 [shape = 'u8[32768]{0}', space=vmem, size = 0x8000, scoped, tag = 'output window, operand 0']
    %17 = vsyncpa [#allocation4], 0
    %s18 = scalar_lea.sflag [#allocation4], 1
    %19 = vsyncpa %s18, 0
    %20 = vsyncpa [#allocation7], 0
    %s21 = scalar_lea.sflag [#allocation7], 1
    %22 = vsyncpa %s21, 0
    %23 = vsyncpa [#allocation10], 0
    %24 = vsyncpa [#allocation5], 0
    %s25 = scalar_lea.sflag [#allocation5], 1
    %26 = vsyncpa %s25, 0
    loop: start=0, step=1, limit=6
    $region2: #{transformer_forward.1} parent=1 // loop_pre_header
      _
    $region3: #{transformer_forward.1} parent=1 // loop_header
      %s28 = sphi 0, %s32
      %p29 = scmp.ge.s32.totalorder %s28, 6
      %s35 = sphi 0, %s47
      %s36 = sphi 0, %s43
      %s37 = sphi 0, %s35
      %s38 = sphi 0, %s36
      %s39 = sphi 0, %s37
      %s40 = sphi 0, %s38
      %s50 = sphi 0, %s52
      %s53 = sphi 0, %s50
      %s54 = sphi 0, %s53
      %s70 = sphi 0, %s54
      %s76 = sphi 0, %s78
      %s79 = sphi 0, %s76
      %s80 = sphi 0, %s79
      %s96 = sphi 0, %s80
      %s102 = sphi 0, %s104
      %s105 = sphi 0, %s102
      %s106 = sphi 0, %s105
      %s122 = sphi 0, %s106
      %s128 = sphi 0, %s130
      %s131 = sphi 0, %s128
      %s132 = sphi 0, %s131
      %s148 = sphi 0, %s132
      %s152 = sphi 0, %s152
      %s154 = sphi 0, %s152
      %s155 = sphi 0, %s154
      %s169 = sphi 0, %s155
      %s173 = sphi 0, %s173
      %s175 = sphi 0, %s173
      %s176 = sphi 0, %s175
      %s190 = sphi 0, %s176
      %s196 = sphi 0, %s198
      %s199 = sphi 0, %s196
      %s200 = sphi 0, %s199
      %s216 = sphi 0, %s200
      %s222 = sphi 0, %s224
      %s225 = sphi 0, %s222
      %s226 = sphi 0, %s225
      %s242 = sphi 0, %s226
      %s248 = sphi 0, %s250
      %s251 = sphi 0, %s248
      %s252 = sphi 0, %s251
      %s268 = sphi 0, %s252
      %s274 = sphi 0, %s276
      %s277 = sphi 0, %s274
      %s278 = sphi 0, %s277
      %s294 = sphi 0, %s278
      %s298 = sphi 0, %s298
      %s300 = sphi 0, %s298
      %s301 = sphi 0, %s300
      %s315 = sphi 0, %s301
      %s319 = sphi 0, %s319
      %s321 = sphi 0, %s319
      %s322 = sphi 0, %s321
      %s336 = sphi 0, %s322
      %s342 = sphi 0, %s344
      %s345 = sphi 0, %s342
      %s346 = sphi 0, %s345
      %s362 = sphi 0, %s346
    $region4: #{transformer_forward.1} parent=1 // loop_header_branch
      %31 = sbr.rel (%p29) target = $region8
    $region5: #{transformer_forward.1} parent=1 // loop_body
      %s33 = ssub.s32 %s28, 1
      %s34 = ssub.s32 %s28, 2
      %s41 = sadd.s32 1, %s36
      %p42 = scmp.ge.s32.totalorder %s41, 2
      %s43 = scalar_select %p42, 0, %s41
      %s44 = sadd.s32 1, %s35
      %s45 = scalar_select %p42, %s44, %s35
      %p46 = scmp.ge.s32.totalorder %s45, 2
      %s47 = scalar_select %p46, 0, %s45
      %s48 = ssub.s32 %s35, %s47
      %p49 = scmp.eq.s32.totalorder %s48, 0
      %s51 = sadd.s32 %s50, 1
      %s52 = scalar_select %p49, %s50, %s51
      %p55 = pneg %p49
      %p56 = scmp.eq.s32.totalorder %s28, 3
      %p57 = por %p55, %p56
      %p58 = scmp.ne.s32.totalorder %s50, %s53
      %p59 = scmp.eq.s32.totalorder %s28, 0
      %p60 = por %p58, %p59
      %p61 = scmp.ne.s32.totalorder %s50, %s53
      %p62 = scmp.eq.s32.totalorder %s33, 3
      %p63 = por %p61, %p62
      %p64 = scmp.ne.s32.totalorder %s53, %s54
      %p65 = scmp.eq.s32.totalorder %s33, 0
      %p66 = por %p64, %p65
      %p67 = scmp.ne.s32.totalorder %s53, %s54
      %p68 = scmp.eq.s32.totalorder %s34, 3
      %p69 = por %p67, %p68
      %p71 = scmp.ne.s32.totalorder %s54, %s70
      %p72 = scmp.eq.s32.totalorder %s34, 0
      %p73 = por %p71, %p72
      %s74 = ssub.s32 %s36, %s43
      %p75 = scmp.eq.s32.totalorder %s74, 0
      %s77 = sadd.s32 %s76, 1
      %s78 = scalar_select %p75, %s76, %s77
      %p81 = pneg %p75
      %p82 = scmp.eq.s32.totalorder %s28, 3
      %p83 = por %p81, %p82
      %p84 = scmp.ne.s32.totalorder %s76, %s79
      %p85 = scmp.eq.s32.totalorder %s28, 0
      %p86 = por %p84, %p85
      %p87 = scmp.ne.s32.totalorder %s76, %s79
      %p88 = scmp.eq.s32.totalorder %s33, 3
      %p89 = por %p87, %p88
      %p90 = scmp.ne.s32.totalorder %s79, %s80
      %p91 = scmp.eq.s32.totalorder %s33, 0
      %p92 = por %p90, %p91
      %p93 = scmp.ne.s32.totalorder %s79, %s80
      %p94 = scmp.eq.s32.totalorder %s34, 3
      %p95 = por %p93, %p94
      %p97 = scmp.ne.s32.totalorder %s80, %s96
      %p98 = scmp.eq.s32.totalorder %s34, 0
      %p99 = por %p97, %p98
      %s100 = ssub.s32 %s36, %s43
      %p101 = scmp.eq.s32.totalorder %s100, 0
      %s103 = sadd.s32 %s102, 1
      %s104 = scalar_select %p101, %s102, %s103
      %p107 = pneg %p101
      %p108 = scmp.eq.s32.totalorder %s28, 3
      %p109 = por %p107, %p108
      %p110 = scmp.ne.s32.totalorder %s102, %s105
      %p111 = scmp.eq.s32.totalorder %s28, 0
      %p112 = por %p110, %p111
      %p113 = scmp.ne.s32.totalorder %s102, %s105
      %p114 = scmp.eq.s32.totalorder %s33, 3
      %p115 = por %p113, %p114
      %p116 = scmp.ne.s32.totalorder %s105, %s106
      %p117 = scmp.eq.s32.totalorder %s33, 0
      %p118 = por %p116, %p117
      %p119 = scmp.ne.s32.totalorder %s105, %s106
      %p120 = scmp.eq.s32.totalorder %s34, 3
      %p121 = por %p119, %p120
      %p123 = scmp.ne.s32.totalorder %s106, %s122
      %p124 = scmp.eq.s32.totalorder %s34, 0
      %p125 = por %p123, %p124
      %s126 = ssub.s32 %s36, %s43
      %p127 = scmp.eq.s32.totalorder %s126, 0
      %s129 = sadd.s32 %s128, 1
      %s130 = scalar_select %p127, %s128, %s129
      %p133 = pneg %p127
      %p134 = scmp.eq.s32.totalorder %s28, 3
      %p135 = por %p133, %p134
      %p136 = scmp.ne.s32.totalorder %s128, %s131
      %p137 = scmp.eq.s32.totalorder %s28, 0
      %p138 = por %p136, %p137
      %p139 = scmp.ne.s32.totalorder %s128, %s131
      %p140 = scmp.eq.s32.totalorder %s33, 3
      %p141 = por %p139, %p140
      %p142 = scmp.ne.s32.totalorder %s131, %s132
      %p143 = scmp.eq.s32.totalorder %s33, 0
      %p144 = por %p142, %p143
      %p145 = scmp.ne.s32.totalorder %s131, %s132
      %p146 = scmp.eq.s32.totalorder %s34, 3
      %p147 = por %p145, %p146
      %p149 = scmp.ne.s32.totalorder %s132, %s148
      %p150 = scmp.eq.s32.totalorder %s34, 0
      %p151 = por %p149, %p150
      %s153 = sadd.s32 %s152, 1
      %p156 = scmp.eq.s32.totalorder %s28, 3
      %p157 = scmp.ne.s32.totalorder %s152, %s154
      %p158 = scmp.eq.s32.totalorder %s28, 0
      %p159 = por %p157, %p158
      %p160 = scmp.ne.s32.totalorder %s152, %s154
      %p161 = scmp.eq.s32.totalorder %s33, 3
      %p162 = por %p160, %p161
      %p163 = scmp.ne.s32.totalorder %s154, %s155
      %p164 = scmp.eq.s32.totalorder %s33, 0
      %p165 = por %p163, %p164
      %p166 = scmp.ne.s32.totalorder %s154, %s155
      %p167 = scmp.eq.s32.totalorder %s34, 3
      %p168 = por %p166, %p167
      %p170 = scmp.ne.s32.totalorder %s155, %s169
      %p171 = scmp.eq.s32.totalorder %s34, 0
      %p172 = por %p170, %p171
      %s174 = sadd.s32 %s173, 1
      %p177 = scmp.eq.s32.totalorder %s28, 3
      %p178 = scmp.ne.s32.totalorder %s173, %s175
      %p179 = scmp.eq.s32.totalorder %s28, 0
      %p180 = por %p178, %p179
      %p181 = scmp.ne.s32.totalorder %s173, %s175
      %p182 = scmp.eq.s32.totalorder %s33, 3
      %p183 = por %p181, %p182
      %p184 = scmp.ne.s32.totalorder %s175, %s176
      %p185 = scmp.eq.s32.totalorder %s33, 0
      %p186 = por %p184, %p185
      %p187 = scmp.ne.s32.totalorder %s175, %s176
      %p188 = scmp.eq.s32.totalorder %s34, 3
      %p189 = por %p187, %p188
      %p191 = scmp.ne.s32.totalorder %s176, %s190
      %p192 = scmp.eq.s32.totalorder %s34, 0
      %p193 = por %p191, %p192
      %s194 = ssub.s32 %s36, %s43
      %p195 = scmp.eq.s32.totalorder %s194, 0
      %s197 = sadd.s32 %s196, 1
      %s198 = scalar_select %p195, %s196, %s197
      %p201 = pneg %p195
      %p202 = scmp.eq.s32.totalorder %s28, 3
      %p203 = por %p201, %p202
      %p204 = scmp.ne.s32.totalorder %s196, %s199
      %p205 = scmp.eq.s32.totalorder %s28, 0
      %p206 = por %p204, %p205
      %p207 = scmp.ne.s32.totalorder %s196, %s199
      %p208 = scmp.eq.s32.totalorder %s33, 3
      %p209 = por %p207, %p208
      %p210 = scmp.ne.s32.totalorder %s199, %s200
      %p211 = scmp.eq.s32.totalorder %s33, 0
      %p212 = por %p210, %p211
      %p213 = scmp.ne.s32.totalorder %s199, %s200
      %p214 = scmp.eq.s32.totalorder %s34, 3
      %p215 = por %p213, %p214
      %p217 = scmp.ne.s32.totalorder %s200, %s216
      %p218 = scmp.eq.s32.totalorder %s34, 0
      %p219 = por %p217, %p218
      %s220 = ssub.s32 %s36, %s43
      %p221 = scmp.eq.s32.totalorder %s220, 0
      %s223 = sadd.s32 %s222, 1
      %s224 = scalar_select %p221, %s222, %s223
      %p227 = pneg %p221
      %p228 = scmp.eq.s32.totalorder %s28, 3
      %p229 = por %p227, %p228
      %p230 = scmp.ne.s32.totalorder %s222, %s225
      %p231 = scmp.eq.s32.totalorder %s28, 0
      %p232 = por %p230, %p231
      %p233 = scmp.ne.s32.totalorder %s222, %s225
      %p234 = scmp.eq.s32.totalorder %s33, 3
      %p235 = por %p233, %p234
      %p236 = scmp.ne.s32.totalorder %s225, %s226
      %p237 = scmp.eq.s32.totalorder %s33, 0
      %p238 = por %p236, %p237
      %p239 = scmp.ne.s32.totalorder %s225, %s226
      %p240 = scmp.eq.s32.totalorder %s34, 3
      %p241 = por %p239, %p240
      %p243 = scmp.ne.s32.totalorder %s226, %s242
      %p244 = scmp.eq.s32.totalorder %s34, 0
      %p245 = por %p243, %p244
      %s246 = ssub.s32 %s36, %s43
      %p247 = scmp.eq.s32.totalorder %s246, 0
      %s249 = sadd.s32 %s248, 1
      %s250 = scalar_select %p247, %s248, %s249
      %p253 = pneg %p247
      %p254 = scmp.eq.s32.totalorder %s28, 3
      %p255 = por %p253, %p254
      %p256 = scmp.ne.s32.totalorder %s248, %s251
      %p257 = scmp.eq.s32.totalorder %s28, 0
      %p258 = por %p256, %p257
      %p259 = scmp.ne.s32.totalorder %s248, %s251
      %p260 = scmp.eq.s32.totalorder %s33, 3
      %p261 = por %p259, %p260
      %p262 = scmp.ne.s32.totalorder %s251, %s252
      %p263 = scmp.eq.s32.totalorder %s33, 0
      %p264 = por %p262, %p263
      %p265 = scmp.ne.s32.totalorder %s251, %s252
      %p266 = scmp.eq.s32.totalorder %s34, 3
      %p267 = por %p265, %p266
      %p269 = scmp.ne.s32.totalorder %s252, %s268
      %p270 = scmp.eq.s32.totalorder %s34, 0
      %p271 = por %p269, %p270
      %s272 = ssub.s32 %s36, %s43
      %p273 = scmp.eq.s32.totalorder %s272, 0
      %s275 = sadd.s32 %s274, 1
      %s276 = scalar_select %p273, %s274, %s275
      %p279 = pneg %p273
      %p280 = scmp.eq.s32.totalorder %s28, 3
      %p281 = por %p279, %p280
      %p282 = scmp.ne.s32.totalorder %s274, %s277
      %p283 = scmp.eq.s32.totalorder %s28, 0
      %p284 = por %p282, %p283
      %p285 = scmp.ne.s32.totalorder %s274, %s277
      %p286 = scmp.eq.s32.totalorder %s33, 3
      %p287 = por %p285, %p286
      %p288 = scmp.ne.s32.totalorder %s277, %s278
      %p289 = scmp.eq.s32.totalorder %s33, 0
      %p290 = por %p288, %p289
      %p291 = scmp.ne.s32.totalorder %s277, %s278
      %p292 = scmp.eq.s32.totalorder %s34, 3
      %p293 = por %p291, %p292
      %p295 = scmp.ne.s32.totalorder %s278, %s294
      %p296 = scmp.eq.s32.totalorder %s34, 0
      %p297 = por %p295, %p296
      %s299 = sadd.s32 %s298, 1
      %p302 = scmp.eq.s32.totalorder %s28, 3
      %p303 = scmp.ne.s32.totalorder %s298, %s300
      %p304 = scmp.eq.s32.totalorder %s28, 0
      %p305 = por %p303, %p304
      %p306 = scmp.ne.s32.totalorder %s298, %s300
      %p307 = scmp.eq.s32.totalorder %s33, 3
      %p308 = por %p306, %p307
      %p309 = scmp.ne.s32.totalorder %s300, %s301
      %p310 = scmp.eq.s32.totalorder %s33, 0
      %p311 = por %p309, %p310
      %p312 = scmp.ne.s32.totalorder %s300, %s301
      %p313 = scmp.eq.s32.totalorder %s34, 3
      %p314 = por %p312, %p313
      %p316 = scmp.ne.s32.totalorder %s301, %s315
      %p317 = scmp.eq.s32.totalorder %s34, 0
      %p318 = por %p316, %p317
      %s320 = sadd.s32 %s319, 1
      %p323 = scmp.eq.s32.totalorder %s28, 3
      %p324 = scmp.ne.s32.totalorder %s319, %s321
      %p325 = scmp.eq.s32.totalorder %s28, 0
      %p326 = por %p324, %p325
      %p327 = scmp.ne.s32.totalorder %s319, %s321
      %p328 = scmp.eq.s32.totalorder %s33, 3
      %p329 = por %p327, %p328
      %p330 = scmp.ne.s32.totalorder %s321, %s322
      %p331 = scmp.eq.s32.totalorder %s33, 0
      %p332 = por %p330, %p331
      %p333 = scmp.ne.s32.totalorder %s321, %s322
      %p334 = scmp.eq.s32.totalorder %s34, 3
      %p335 = por %p333, %p334
      %p337 = scmp.ne.s32.totalorder %s322, %s336
      %p338 = scmp.eq.s32.totalorder %s34, 0
      %p339 = por %p337, %p338
      %s340 = ssub.s32 %s35, %s47
      %p341 = scmp.eq.s32.totalorder %s340, 0
      %s343 = sadd.s32 %s342, 1
      %s344 = scalar_select %p341, %s342, %s343
      %p347 = pneg %p341
      %p348 = scmp.eq.s32.totalorder %s28, 3
      %p349 = por %p347, %p348
      %p350 = scmp.ne.s32.totalorder %s342, %s345
      %p351 = scmp.eq.s32.totalorder %s28, 0
      %p352 = por %p350, %p351
      %p353 = scmp.ne.s32.totalorder %s342, %s345
      %p354 = scmp.eq.s32.totalorder %s33, 3
      %p355 = por %p353, %p354
      %p356 = scmp.ne.s32.totalorder %s345, %s346
      %p357 = scmp.eq.s32.totalorder %s33, 0
      %p358 = por %p356, %p357
      %p359 = scmp.ne.s32.totalorder %s345, %s346
      %p360 = scmp.eq.s32.totalorder %s34, 3
      %p361 = por %p359, %p360
      %p363 = scmp.ne.s32.totalorder %s346, %s362
      %p364 = scmp.eq.s32.totalorder %s34, 0
      %p365 = por %p363, %p364
      %p366 = scmp.le.s32.totalorder 1, %s28
      %p367 = scmp.lt.s32.totalorder %s28, 5
      %p368 = pnand %p366, %p367
      %p369 = pneg %p368
      // Predicated region
      $region9: #{transformer_forward.1} parent=5 // pred_check
        _
      $region10: #{transformer_forward.1} parent=5 // pred_check_branch
        %371 = sbr.rel (%p368) target = $region12
      $region11: #{transformer_forward.1} parent=5 // pred_region
        %s372 = ssub.s32 %s28, 1
        // Predicated region
        $region13: #{transformer_forward.1} parent=11 // pred_check
          %p373 = pneg %p165
        $region14: #{transformer_forward.1} parent=11 // pred_check_branch
          %375 = sbr.rel (%p373) target = $region16
        $region15: #{transformer_forward.1} parent=11 // pred_region
          _
        $region16: #{transformer_forward.1} parent=11 // pred_fallthru
          _
        // Predicated region
        $region17: #{transformer_forward.1} parent=11 // pred_check
          %p376 = pneg %p186
        $region18: #{transformer_forward.1} parent=11 // pred_check_branch
          %378 = sbr.rel (%p376) target = $region20
        $region19: #{transformer_forward.1} parent=11 // pred_region
          _
        $region20: #{transformer_forward.1} parent=11 // pred_fallthru
          _
        // Predicated region
        $region21: #{transformer_forward.1} parent=11 // pred_check
          %p379 = pneg %p311
        $region22: #{transformer_forward.1} parent=11 // pred_check_branch
          %381 = sbr.rel (%p379) target = $region24
        $region23: #{transformer_forward.1} parent=11 // pred_region
          _
        $region24: #{transformer_forward.1} parent=11 // pred_fallthru
          _
        // Predicated region
        $region25: #{transformer_forward.1} parent=11 // pred_check
          %p382 = pneg %p332
        $region26: #{transformer_forward.1} parent=11 // pred_check_branch
          %384 = sbr.rel (%p382) target = $region28
        $region27: #{transformer_forward.1} parent=11 // pred_region
          %s386 = ssub.s32 4096, 4096
          %387 = vsyncadd [#allocation10], %s386
          %s388 = sshll.u32 [#allocation9], 4
          %s389 = int_to_ptr.vmem [resolvable:$true] %s388
          %394 = dma.hbm_to_vmem [thread:$0]  %s11, 4096, %s389, [#allocation10], 64, 64, 4
        $region28: #{transformer_forward.1} parent=11 // pred_fallthru
          _
      $region12: #{transformer_forward.1} parent=5 // pred_fallthru
        _
      %p395 = scmp.lt.s32.totalorder %s28, 4
      // Predicated region
      $region29: #{transformer_forward.1} parent=5 // pred_check
        %p396 = pneg %p395
      $region30: #{transformer_forward.1} parent=5 // pred_check_branch
        %398 = sbr.rel (%p396) target = $region32
      $region31: #{transformer_forward.1} parent=5 // pred_region
        // Predicated region
        $region33: #{transformer_forward.1} parent=31 // pred_check
          %p399 = pneg %p60
        $region34: #{transformer_forward.1} parent=31 // pred_check_branch
          %401 = sbr.rel (%p399) target = $region36
        $region35: #{transformer_forward.1} parent=31 // pred_region
          %p402 = scmp.lt.s32.totalorder %s35, 1
          %s403 = scalar_select %p402, %s35, 1
          %s404 = smul.addr %s403, 8
          %s405 = scalar_lea.vmem %s0, %s404
        $region36: #{transformer_forward.1} parent=31 // pred_fallthru
          _
        // Predicated region
        $region37: #{transformer_forward.1} parent=31 // pred_check
          %p406 = pneg %p86
        $region38: #{transformer_forward.1} parent=31 // pred_check_branch
          %408 = sbr.rel (%p406) target = $region40
        $region39: #{transformer_forward.1} parent=31 // pred_region
          %p409 = scmp.lt.s32.totalorder %s36, 1
          %s410 = scalar_select %p409, %s36, 1
          %s411 = scalar_lea.vmem %s1, %s410
        $region40: #{transformer_forward.1} parent=31 // pred_fallthru
          _
        // Predicated region
        $region41: #{transformer_forward.1} parent=31 // pred_check
          %p412 = pneg %p112
        $region42: #{transformer_forward.1} parent=31 // pred_check_branch
          %414 = sbr.rel (%p412) target = $region44
        $region43: #{transformer_forward.1} parent=31 // pred_region
          %s415 = sand.u32 %s102, 1
          %s416 = scalar_lea.sflag [#allocation4], %s415
          %s417 = sand.u32 %s102, 1
          %s418 = smul.addr %s417, 128
          %s419 = scalar_lea.vmem [#allocation3], %s418
          %s421 = ssub.s32 2048, 2048
          %422 = vsyncadd %s416, %s421
          %s423 = smul.addr %s36, 32
          %s424 = smul.addr %s423, 64
          %s425 = scalar_lea.hbm %s2, %s424
          %s426 = sshll.u32 %s419, 4
          %s427 = int_to_ptr.vmem [resolvable:$true] %s426
          %432 = dma.hbm_to_vmem [thread:$0]  %s425, 2048, %s427, %s416, 128, 128, 8
        $region44: #{transformer_forward.1} parent=31 // pred_fallthru
          _
        // Predicated region
        $region45: #{transformer_forward.1} parent=31 // pred_check
          %p433 = pneg %p138
        $region46: #{transformer_forward.1} parent=31 // pred_check_branch
          %435 = sbr.rel (%p433) target = $region48
        $region47: #{transformer_forward.1} parent=31 // pred_region
          %p436 = scmp.lt.s32.totalorder %s36, 1
          %s437 = scalar_select %p436, %s36, 1
          %s438 = smul.addr %s437, 2
          %s439 = scalar_lea.vmem %s3, %s438
        $region48: #{transformer_forward.1} parent=31 // pred_fallthru
          _
        // Predicated region
        $region49: #{transformer_forward.1} parent=31 // pred_check
          %p440 = pneg %p206
        $region50: #{transformer_forward.1} parent=31 // pred_check_branch
          %442 = sbr.rel (%p440) target = $region52
        $region51: #{transformer_forward.1} parent=31 // pred_region
          %p443 = scmp.lt.s32.totalorder %s36, 1
          %s444 = scalar_select %p443, %s36, 1
          %s445 = smul.addr %s444, 16
          %s446 = smul.addr %s445, 4
          %s447 = scalar_lea.vmem %s6, %s446
        $region52: #{transformer_forward.1} parent=31 // pred_fallthru
          _
        // Predicated region
        $region53: #{transformer_forward.1} parent=31 // pred_check
          %p448 = pneg %p232
        $region54: #{transformer_forward.1} parent=31 // pred_check_branch
          %450 = sbr.rel (%p448) target = $region56
        $region55: #{transformer_forward.1} parent=31 // pred_region
          %p451 = scmp.lt.s32.totalorder %s36, 1
          %s452 = scalar_select %p451, %s36, 1
          %s453 = scalar_lea.vmem %s7, %s452
        $region56: #{transformer_forward.1} parent=31 // pred_fallthru
          _
        // Predicated region
        $region57: #{transformer_forward.1} parent=31 // pred_check
          %p454 = pneg %p258
        $region58: #{transformer_forward.1} parent=31 // pred_check_branch
          %456 = sbr.rel (%p454) target = $region60
        $region59: #{transformer_forward.1} parent=31 // pred_region
          %s457 = sand.u32 %s28, 1
          %s458 = scalar_lea.sflag [#allocation7], %s457
          %s459 = sand.u32 %s248, 1
          %s460 = smul.addr %s459, 256
          %s461 = scalar_lea.vmem [#allocation6], %s460
          %s463 = ssub.s32 4096, 4096
          %464 = vsyncadd %s458, %s463
          %s465 = smul.addr %s36, 64
          %s466 = smul.addr %s465, 64
          %s467 = scalar_lea.hbm %s8, %s466
          %s468 = sshll.u32 %s461, 4
          %s469 = int_to_ptr.vmem [resolvable:$true] %s468
          %474 = dma.hbm_to_vmem [thread:$0]  %s467, 4096, %s469, %s458, 256, 256, 16
        $region60: #{transformer_forward.1} parent=31 // pred_fallthru
          _
        // Predicated region
        $region61: #{transformer_forward.1} parent=31 // pred_check
          %p475 = pneg %p284
        $region62: #{transformer_forward.1} parent=31 // pred_check_branch
          %477 = sbr.rel (%p475) target = $region64
        $region63: #{transformer_forward.1} parent=31 // pred_region
          %s478 = sand.u32 %s28, 1
          %s479 = scalar_lea.sflag [#allocation7], %s478
          %s480 = sand.u32 %s274, 1
          %s481 = smul.addr %s480, 128
          %s482 = scalar_lea.vmem [#allocation8], %s481
          %s484 = ssub.s32 2048, 2048
          %485 = vsyncadd %s479, %s484
          %s486 = smul.addr %s36, 32
          %s487 = smul.addr %s486, 64
          %s488 = scalar_lea.hbm %s9, %s487
          %s489 = sshll.u32 %s482, 4
          %s490 = int_to_ptr.vmem [resolvable:$true] %s489
          %495 = dma.hbm_to_vmem [thread:$0]  %s488, 2048, %s490, %s479, 64, 64, 4
        $region64: #{transformer_forward.1} parent=31 // pred_fallthru
          _
      $region32: #{transformer_forward.1} parent=5 // pred_fallthru
        _
      %p496 = scmp.le.s32.totalorder 1, %s28
      %p497 = scmp.lt.s32.totalorder %s28, 5
      %p498 = pnand %p496, %p497
      %p499 = pneg %p498
      // Predicated region
      $region65: #{transformer_forward.1} parent=5 // pred_check
        _
      $region66: #{transformer_forward.1} parent=5 // pred_check_branch
        %501 = sbr.rel (%p498) target = $region68
      $region67: #{transformer_forward.1} parent=5 // pred_region
        %s502 = ssub.s32 %s28, 1
        %s503 = sand.u32 %s105, 1
        %s504 = scalar_lea.sflag [#allocation4], %s503
        %s505 = sand.u32 %s105, 1
        %s506 = smul.addr %s505, 128
        %s507 = scalar_lea.vmem [#allocation3], %s506
        // Predicated region
        $region69: #{transformer_forward.1} parent=67 // pred_check
          %p508 = pneg %p118
        $region70: #{transformer_forward.1} parent=67 // pred_check_branch
          %510 = sbr.rel (%p508) target = $region72
        $region71: #{transformer_forward.1} parent=67 // pred_region
          %511 = dma.done %s504, 2048
        $region72: #{transformer_forward.1} parent=67 // pred_fallthru
          _
        %s512 = sand.u32 %s33, 1
        %s513 = scalar_lea.sflag [#allocation7], %s512
        %s514 = sand.u32 %s251, 1
        %s515 = smul.addr %s514, 256
        %s516 = scalar_lea.vmem [#allocation6], %s515
        // Predicated region
        $region73: #{transformer_forward.1} parent=67 // pred_check
          %p517 = pneg %p264
        $region74: #{transformer_forward.1} parent=67 // pred_check_branch
          %519 = sbr.rel (%p517) target = $region76
        $region75: #{transformer_forward.1} parent=67 // pred_region
          %520 = dma.done %s513, 4096
        $region76: #{transformer_forward.1} parent=67 // pred_fallthru
          _
        %s521 = sand.u32 %s33, 1
        %s522 = scalar_lea.sflag [#allocation7], %s521
        %s523 = sand.u32 %s277, 1
        %s524 = smul.addr %s523, 128
        %s525 = scalar_lea.vmem [#allocation8], %s524
        // Predicated region
        $region77: #{transformer_forward.1} parent=67 // pred_check
          %p526 = pneg %p290
        $region78: #{transformer_forward.1} parent=67 // pred_check_branch
          %528 = sbr.rel (%p526) target = $region80
        $region79: #{transformer_forward.1} parent=67 // pred_region
          %529 = dma.done %s522, 2048
        $region80: #{transformer_forward.1} parent=67 // pred_fallthru
          _
        // Predicated region
        $region81: #{transformer_forward.1} parent=67 // pred_check
          %p530 = pneg %p332
        $region82: #{transformer_forward.1} parent=67 // pred_check_branch
          %532 = sbr.rel (%p530) target = $region84
        $region83: #{transformer_forward.1} parent=67 // pred_region
          %533 = dma.done [#allocation10], 4096
        $region84: #{transformer_forward.1} parent=67 // pred_fallthru
          _
        %p534 = scmp.lt.s32.totalorder %s37, 1
        %s535 = scalar_select %p534, %s37, 1
        %s536 = smul.addr %s535, 8
        %s537 = scalar_lea.vmem %s0, %s536
        %p538 = pneg %p66
        %p539 = pneg %p63
        %p540 = scmp.lt.s32.totalorder %s38, 1
        %s541 = scalar_select %p540, %s38, 1
        %s542 = scalar_lea.vmem %s1, %s541
        %p543 = pneg %p92
        %p544 = pneg %p89
        %s545 = sand.u32 %s105, 1
        %s546 = scalar_lea.sflag [#allocation4], %s545
        %s547 = sand.u32 %s105, 1
        %s548 = smul.addr %s547, 128
        %s549 = scalar_lea.vmem [#allocation3], %s548
        %p550 = pneg %p118
        %p551 = pneg %p115
        %p552 = scmp.lt.s32.totalorder %s38, 1
        %s553 = scalar_select %p552, %s38, 1
        %s554 = smul.addr %s553, 2
        %s555 = scalar_lea.vmem %s3, %s554
        %p556 = pneg %p144
        %p557 = pneg %p141
        %p558 = pneg %p165
        %p559 = pneg %p162
        %p560 = pneg %p186
        %p561 = pneg %p183
        %p562 = scmp.lt.s32.totalorder %s38, 1
        %s563 = scalar_select %p562, %s38, 1
        %s564 = smul.addr %s563, 16
        %s565 = smul.addr %s564, 4
        %s566 = scalar_lea.vmem %s6, %s565
        %p567 = pneg %p212
        %p568 = pneg %p209
        %p569 = scmp.lt.s32.totalorder %s38, 1
        %s570 = scalar_select %p569, %s38, 1
        %s571 = scalar_lea.vmem %s7, %s570
        %p572 = pneg %p238
        %p573 = pneg %p235
        %s574 = sand.u32 %s33, 1
        %s575 = scalar_lea.sflag [#allocation7], %s574
        %s576 = sand.u32 %s251, 1
        %s577 = smul.addr %s576, 256
        %s578 = scalar_lea.vmem [#allocation6], %s577
        %p579 = pneg %p264
        %p580 = pneg %p261
        %s581 = sand.u32 %s33, 1
        %s582 = scalar_lea.sflag [#allocation7], %s581
        %s583 = sand.u32 %s277, 1
        %s584 = smul.addr %s583, 128
        %s585 = scalar_lea.vmem [#allocation8], %s584
        %p586 = pneg %p290
        %p587 = pneg %p287
        %p588 = pneg %p311
        %p589 = pneg %p308
        %p590 = pneg %p332
        %p591 = pneg %p329
        %p592 = pneg %p358
        %p593 = pneg %p355
        %s594 = sand.u32 %s345, 1
        %s595 = scalar_lea.sflag [#allocation5], %s594
        %s596 = sand.u32 %s345, 1
        %s597 = smul.addr %s596, 32
        %s598 = scalar_lea.vmem [#allocation11], %s597
        %p599 = scmp.lt.s32.totalorder %s37, 1
        %s600 = scalar_select %p599, %s37, 1
        %s601 = smul.addr %s600, 8
        %s602 = scalar_lea.vmem %s0, %s601
        %p603 = scmp.lt.s32.totalorder %s38, 1
        %s604 = scalar_select %p603, %s38, 1
        %s605 = scalar_lea.vmem %s1, %s604
        %p606 = scmp.lt.s32.totalorder %s38, 1
        %s607 = scalar_select %p606, %s38, 1
        %s608 = smul.addr %s607, 2
        %s609 = scalar_lea.vmem %s3, %s608
        %p610 = scmp.lt.s32.totalorder %s38, 1
        %s611 = scalar_select %p610, %s38, 1
        %s612 = smul.addr %s611, 16
        %s613 = smul.addr %s612, 4
        %s614 = scalar_lea.vmem %s6, %s613
        %p615 = scmp.lt.s32.totalorder %s38, 1
        %s616 = scalar_select %p615, %s38, 1
        %s617 = scalar_lea.vmem %s7, %s616
        %p619 = scmp.eq.s32.totalorder %s38, 0
        // Predicated region
        $region85: #{transformer_forward.1} parent=67 // pred_check
          %p620 = pneg %p619
        $region86: #{transformer_forward.1} parent=67 // pred_check_branch
          %622 = sbr.rel (%p620) target = $region88
        $region87: #{transformer_forward.1} parent=67 // pred_region
          %v623 = vld [vmem:[%s602] sm:$0xff]
          %624 = vst [vmem:[#allocation2] sm:$0xff] %v623
        $region88: #{transformer_forward.1} parent=67 // pred_fallthru
          _
        %v625 = vld [vmem:[#allocation2] sm:$0xff]
        %v626 = vld [vmem:[%s605] sm:$0x1]
        %v627 = vmul.f32 %v625, %v625
        %628 = vadd.xlane.f32.xlu0 %v627
        %v629 = vpop.xlane.xlu0 %628
        %v630 = vrcp.pop 128.0
        %v631 = vmul.f32 %v629, %v630
        %v632 = vadd.f32 %v631, 1e-06
        %v633 = vrsqrt.pop %v632
        %v634 = vmul.f32 %v625, %v633
        %v636 = vlaneseq
        %v637 = vshrl.u32 %v636, 7
        %v638 = vsub.s32 0, %v637
        %v639 = vrot.slane %v626, %v638
        %v641 = vmul.f32 %v634, %v639
        %v642 = vld [vmem:[%s507] sm:$0xff]
        %v643 = vld [vmem:[%s507 + $0x8] sm:$0xff]
        %v644 = vld [vmem:[%s507 + $0x10] sm:$0xff]
        %v645 = vld [vmem:[%s507 + $0x18] sm:$0xff]
        %v646 = vld [vmem:[%s507 + $0x20] sm:$0xff]
        %v647 = vld [vmem:[%s507 + $0x28] sm:$0xff]
        %v648 = vld [vmem:[%s507 + $0x30] sm:$0xff]
        %v649 = vld [vmem:[%s507 + $0x38] sm:$0xff]
        %v650 = vld [vmem:[%s507 + $0x40] sm:$0xff]
        %v651 = vld [vmem:[%s507 + $0x48] sm:$0xff]
        %v652 = vld [vmem:[%s507 + $0x50] sm:$0xff]
        %v653 = vld [vmem:[%s507 + $0x58] sm:$0xff]
        %v654 = vld [vmem:[%s507 + $0x60] sm:$0xff]
        %v655 = vld [vmem:[%s507 + $0x68] sm:$0xff]
        %v656 = vld [vmem:[%s507 + $0x70] sm:$0xff]
        %v657 = vld [vmem:[%s507 + $0x78] sm:$0xff]
        %v658 = vpack.c.bf16 %v641, %v641
        %v659 = vld [vmem:[%s609] sm:$0x3]
        %v661 = vlaneseq
        %v662 = vshrl.u32 %v661, 7
        %v663 = vsub.s32 0, %v662
        %v664 = vrot.slane %v659, %v663
        %v665 = vlaneseq
        %v666 = vshrl.u32 %v665, 7
        %v667 = vsub.s32 1, %v666
        %v668 = vrot.slane %v659, %v667
        %v687 = vunpack.c.l.b16 %v642
        %v688 = vunpack.c.h.b16 %v642
        %v689 = vunpack.c.l.b16 %v643
        %v690 = vunpack.c.h.b16 %v643
        %v691 = vunpack.c.l.b16 %v644
        %v692 = vunpack.c.h.b16 %v644
        %v693 = vunpack.c.l.b16 %v645
        %v694 = vunpack.c.h.b16 %v645
        %v695 = vunpack.c.l.b16 %v646
        %v696 = vunpack.c.h.b16 %v646
        %v697 = vunpack.c.l.b16 %v647
        %v698 = vunpack.c.h.b16 %v647
        %v699 = vunpack.c.l.b16 %v648
        %v700 = vunpack.c.h.b16 %v648
        %v701 = vunpack.c.l.b16 %v649
        %v702 = vunpack.c.h.b16 %v649
        %v703 = vunpack.c.l.b16 %v650
        %v704 = vunpack.c.h.b16 %v650
        %v705 = vunpack.c.l.b16 %v651
        %v706 = vunpack.c.h.b16 %v651
        %v707 = vunpack.c.l.b16 %v652
        %v708 = vunpack.c.h.b16 %v652
        %v709 = vunpack.c.l.b16 %v653
        %v710 = vunpack.c.h.b16 %v653
        %v711 = vunpack.c.l.b16 %v654
        %v712 = vunpack.c.h.b16 %v654
        %v713 = vunpack.c.l.b16 %v655
        %v714 = vunpack.c.h.b16 %v655
        %v715 = vunpack.c.l.b16 %v656
        %v716 = vunpack.c.h.b16 %v656
        %v717 = vunpack.c.l.b16 %v657
        %v718 = vunpack.c.h.b16 %v657
        %v719 = vpack.c.b16 %v689, %v687
        %v720 = vpack.c.b16 %v690, %v688
        %v721 = vpack.c.b16 %v693, %v691
        %v722 = vpack.c.b16 %v694, %v692
        %v723 = vpack.c.b16 %v697, %v695
        %v724 = vpack.c.b16 %v698, %v696
        %v725 = vpack.c.b16 %v701, %v699
        %v726 = vpack.c.b16 %v702, %v700
        %v727 = vpack.c.b16 %v705, %v703
        %v728 = vpack.c.b16 %v706, %v704
        %v729 = vpack.c.b16 %v709, %v707
        %v730 = vpack.c.b16 %v710, %v708
        %v731 = vpack.c.b16 %v713, %v711
        %v732 = vpack.c.b16 %v714, %v712
        %v733 = vpack.c.b16 %v717, %v715
        %v734 = vpack.c.b16 %v718, %v716
        %751 = vmatprep.subr.bf16.mxu0 %v720
        %752 = vmatpush1.bf16.msra.mxu0 %v719
        %753 = vmatprep.subr.bf16.mxu0 %v722
        %754 = vmatpush1.bf16.msra.mxu0 %v721
        %755 = vmatprep.subr.bf16.mxu0 %v724
        %756 = vmatpush1.bf16.msra.mxu0 %v723
        %757 = vmatprep.subr.bf16.mxu0 %v726
        %758 = vmatpush1.bf16.msra.mxu0 %v725
        %759 = vmatprep.subr.bf16.mxu0 %v728
        %760 = vmatpush1.bf16.msra.mxu0 %v727
        %761 = vmatprep.subr.bf16.mxu0 %v730
        %762 = vmatpush1.bf16.msra.mxu0 %v729
        %763 = vmatprep.subr.bf16.mxu0 %v732
        %764 = vmatpush1.bf16.msra.mxu0 %v731
        %765 = vmatprep.subr.bf16.mxu0 %v734
        %766 = vmatpush1.bf16.msra.mxu0 %v733
        %767 = vmatprep.subr.bf16.mxu0 0
        %768 = vmatpush1.bf16.msra.mxu0 0
        %769 = vmatprep.subr.bf16.mxu0 0
        %770 = vmatpush1.bf16.msra.mxu0 0
        %771 = vmatprep.subr.bf16.mxu0 0
        %772 = vmatpush1.bf16.msra.mxu0 0
        %773 = vmatprep.subr.bf16.mxu0 0
        %774 = vmatpush1.bf16.msra.mxu0 0
        %775 = vmatprep.subr.bf16.mxu0 0
        %776 = vmatpush1.bf16.msra.mxu0 0
        %777 = vmatprep.subr.bf16.mxu0 0
        %778 = vmatpush1.bf16.msra.mxu0 0
        %779 = vmatprep.subr.bf16.mxu0 0
        %780 = vmatpush1.bf16.msra.mxu0 0
        %781 = vmatprep.subr.bf16.mxu0 0
        %782 = vmatpush1.bf16.msra.mxu0 0
        %783 = vmatprep.mubr.bf16.mxu0 0
        %784 = vmatmul.mubr.bf16.gmra.mrb[0].mxu0 %v658
        %v785 = vpop.f32.mrb[0].mxu0
        %v786 = vadd.f32 %v664, %v785
        %v787 = vpop.f32.mrb[0].mxu0
        %v788 = vadd.f32 %v668, %v787
        %v789 = vpop.f32.mrb[0].mxu0
        %v790 = vpop.f32.mrb[0].mxu0
        %791 = vdwg.mxu0
        %793 = vrot.lane.b32.xlu0 %v786, 96
        %v794 = vpop.permute.xlu0 %793
        %796 = vrot.lane.b32.xlu0 %v786, 64
        %v797 = vpop.permute.xlu0 %796
        %799 = vrot.lane.b32.xlu0 %v786, 32
        %v800 = vpop.permute.xlu0 %799
        %803 = vrot.lane.b32.xlu0 %v788, 96
        %v804 = vpop.permute.xlu0 %803
        %v806 = vld [vmem:[%s4] sm:$0xff]
        %v807 = vld [vmem:[%s5] sm:$0xff]
        %v808 = vsub.f32 0.0, %v786
        %v809 = vsub.f32 0.0, %v794
        %v810 = vsub.f32 0.0, %v797
        %v811 = vsub.f32 0.0, %v800
        %816 = vrot.lane.b32.xlu0 %v808, 112
        %v817 = vpop.permute.xlu0 %816
        %818 = vrot.lane.b32.xlu0 %v809, 112
        %v819 = vpop.permute.xlu0 %818
        %820 = vrot.lane.b32.xlu0 %v810, 112
        %v821 = vpop.permute.xlu0 %820
        %822 = vrot.lane.b32.xlu0 %v811, 112
        %v823 = vpop.permute.xlu0 %822
        %828 = vrot.lane.b32.xlu0 %v786, 16
        %v829 = vpop.permute.xlu0 %828
        %830 = vrot.lane.b32.xlu0 %v794, 16
        %v831 = vpop.permute.xlu0 %830
        %832 = vrot.lane.b32.xlu0 %v797, 16
        %v833 = vpop.permute.xlu0 %832
        %834 = vrot.lane.b32.xlu0 %v800, 16
        %v835 = vpop.permute.xlu0 %834
        %vm840 = vcmask 130048
        %v841 = vsel %vm840, %v817, %v829
        %v842 = vsel %vm840, %v819, %v831
        %v843 = vsel %vm840, %v821, %v833
        %v844 = vsel %vm840, %v823, %v835
        %v845 = vmul.f32 %v786, %v806
        %v846 = vmul.f32 %v794, %v806
        %v847 = vmul.f32 %v797, %v806
        %v848 = vmul.f32 %v800, %v806
        %v849 = vmul.f32 %v841, %v807
        %v850 = vmul.f32 %v842, %v807
        %v851 = vmul.f32 %v843, %v807
        %v852 = vmul.f32 %v844, %v807
        %v853 = vadd.f32 %v845, %v849
        %v854 = vadd.f32 %v846, %v850
        %v855 = vadd.f32 %v847, %v851
        %v856 = vadd.f32 %v848, %v852
        %v857 = vmul.f32 %v853, 0.17677669
        %v858 = vmul.f32 %v854, 0.17677669
        %v859 = vmul.f32 %v855, 0.17677669
        %v860 = vmul.f32 %v856, 0.17677669
        %v861 = vsub.f32 0.0, %v788
        %v862 = vsub.f32 0.0, %v804
        %865 = vrot.lane.b32.xlu0 %v861, 112
        %v866 = vpop.permute.xlu0 %865
        %867 = vrot.lane.b32.xlu0 %v862, 112
        %v868 = vpop.permute.xlu0 %867
        %871 = vrot.lane.b32.xlu0 %v788, 16
        %v872 = vpop.permute.xlu0 %871
        %873 = vrot.lane.b32.xlu0 %v804, 16
        %v874 = vpop.permute.xlu0 %873
        %v877 = vsel %vm840, %v866, %v872
        %v878 = vsel %vm840, %v868, %v874
        %v879 = vmul.f32 %v788, %v806
        %v880 = vmul.f32 %v804, %v806
        %v881 = vmul.f32 %v877, %v807
        %v882 = vmul.f32 %v878, %v807
        %v883 = vadd.f32 %v879, %v881
        %v884 = vadd.f32 %v880, %v882
        %v885 = vlaneseq
        %v886 = vshrl.u32 %v885, 7
        %v887 = vlaneseq
        %v888 = vand.u32 %v887, 127
        %vm889 = vcmp.le.s32.totalorder %v888, %v886
        %v890 = vpack.c.bf16 %v857, %v857
        %v891 = vpack.c.bf16 %v858, %v858
        %v892 = vpack.c.bf16 %v859, %v859
        %v893 = vpack.c.bf16 %v860, %v860
        %v894 = vpack.c.bf16 %v883, %v883
        %v895 = vpack.c.bf16 %v884, %v884
        %vm896 = vcmask 261120
        %v898 = vsel %vm896, %v890, 0
        %v901 = vsel %vm896, %v894, 0
        %903 = vmatprep.subr.bf16.mxu0 0
        %904 = vmatpush1.bf16.xpose.msra.mxu0 %v901
        %905 = vmatprep.subr.bf16.mxu0 0
        %906 = vmatpush1.bf16.xpose.msra.mxu0 0
        %907 = vmatprep.subr.bf16.mxu0 0
        %908 = vmatpush1.bf16.xpose.msra.mxu0 0
        %909 = vmatprep.subr.bf16.mxu0 0
        %910 = vmatpush1.bf16.xpose.msra.mxu0 0
        %911 = vmatprep.subr.bf16.mxu0 0
        %912 = vmatpush1.bf16.xpose.msra.mxu0 0
        %913 = vmatprep.subr.bf16.mxu0 0
        %914 = vmatpush1.bf16.xpose.msra.mxu0 0
        %915 = vmatprep.subr.bf16.mxu0 0
        %916 = vmatpush1.bf16.xpose.msra.mxu0 0
        %917 = vmatprep.subr.bf16.mxu0 0
        %918 = vmatpush1.bf16.xpose.msra.mxu0 0
        %919 = vmatprep.subr.bf16.mxu0 0
        %920 = vmatpush1.bf16.xpose.msra.mxu0 0
        %921 = vmatprep.subr.bf16.mxu0 0
        %922 = vmatpush1.bf16.xpose.msra.mxu0 0
        %923 = vmatprep.subr.bf16.mxu0 0
        %924 = vmatpush1.bf16.xpose.msra.mxu0 0
        %925 = vmatprep.subr.bf16.mxu0 0
        %926 = vmatpush1.bf16.xpose.msra.mxu0 0
        %927 = vmatprep.subr.bf16.mxu0 0
        %928 = vmatpush1.bf16.xpose.msra.mxu0 0
        %929 = vmatprep.subr.bf16.mxu0 0
        %930 = vmatpush1.bf16.xpose.msra.mxu0 0
        %931 = vmatprep.subr.bf16.mxu0 0
        %932 = vmatpush1.bf16.xpose.msra.mxu0 0
        %933 = vmatprep.subr.bf16.mxu0 0
        %934 = vmatpush1.bf16.xpose.msra.mxu0 0
        %935 = vmatprep.mubr.bf16.mxu0 0
        %936 = vmatmul.mubr.bf16.gmra.mrb[0].mxu0 %v898
        %v937 = vpop.f32.mrb[0].mxu0
        %v938 = vadd.f32 0.0, %v937
        %v939 = vpop.f32.mrb[0].mxu0
        %v940 = vpop.f32.mrb[0].mxu0
        %v941 = vpop.f32.mrb[0].mxu0
        %942 = vdwg.mxu0
        %v944 = vsel %vm896, %v891, 0
        %946 = vmatprep.subr.bf16.mxu0 0
        %947 = vmatpush1.bf16.xpose.msra.mxu0 %v901
        %948 = vmatprep.subr.bf16.mxu0 0
        %949 = vmatpush1.bf16.xpose.msra.mxu0 0
        %950 = vmatprep.subr.bf16.mxu0 0
        %951 = vmatpush1.bf16.xpose.msra.mxu0 0
        %952 = vmatprep.subr.bf16.mxu0 0
        %953 = vmatpush1.bf16.xpose.msra.mxu0 0
        %954 = vmatprep.subr.bf16.mxu0 0
        %955 = vmatpush1.bf16.xpose.msra.mxu0 0
        %956 = vmatprep.subr.bf16.mxu0 0
        %957 = vmatpush1.bf16.xpose.msra.mxu0 0
        %958 = vmatprep.subr.bf16.mxu0 0
        %959 = vmatpush1.bf16.xpose.msra.mxu0 0
        %960 = vmatprep.subr.bf16.mxu0 0
        %961 = vmatpush1.bf16.xpose.msra.mxu0 0
        %962 = vmatprep.subr.bf16.mxu0 0
        %963 = vmatpush1.bf16.xpose.msra.mxu0 0
        %964 = vmatprep.subr.bf16.mxu0 0
        %965 = vmatpush1.bf16.xpose.msra.mxu0 0
        %966 = vmatprep.subr.bf16.mxu0 0
        %967 = vmatpush1.bf16.xpose.msra.mxu0 0
        %968 = vmatprep.subr.bf16.mxu0 0
        %969 = vmatpush1.bf16.xpose.msra.mxu0 0
        %970 = vmatprep.subr.bf16.mxu0 0
        %971 = vmatpush1.bf16.xpose.msra.mxu0 0
        %972 = vmatprep.subr.bf16.mxu0 0
        %973 = vmatpush1.bf16.xpose.msra.mxu0 0
        %974 = vmatprep.subr.bf16.mxu0 0
        %975 = vmatpush1.bf16.xpose.msra.mxu0 0
        %976 = vmatprep.subr.bf16.mxu0 0
        %977 = vmatpush1.bf16.xpose.msra.mxu0 0
        %978 = vmatprep.mubr.bf16.mxu0 0
        %979 = vmatmul.mubr.bf16.gmra.mrb[0].mxu0 %v944
        %v980 = vpop.f32.mrb[0].mxu0
        %v981 = vadd.f32 0.0, %v980
        %v982 = vpop.f32.mrb[0].mxu0
        %v983 = vpop.f32.mrb[0].mxu0
        %v984 = vpop.f32.mrb[0].mxu0
        %985 = vdwg.mxu0
        %v987 = vsel %vm896, %v892, 0
        %v990 = vsel %vm896, %v895, 0
        %992 = vmatprep.subr.bf16.mxu0 0
        %993 = vmatpush1.bf16.xpose.msra.mxu0 %v990
        %994 = vmatprep.subr.bf16.mxu0 0
        %995 = vmatpush1.bf16.xpose.msra.mxu0 0
        %996 = vmatprep.subr.bf16.mxu0 0
        %997 = vmatpush1.bf16.xpose.msra.mxu0 0
        %998 = vmatprep.subr.bf16.mxu0 0
        %999 = vmatpush1.bf16.xpose.msra.mxu0 0
        %1000 = vmatprep.subr.bf16.mxu0 0
        %1001 = vmatpush1.bf16.xpose.msra.mxu0 0
        %1002 = vmatprep.subr.bf16.mxu0 0
        %1003 = vmatpush1.bf16.xpose.msra.mxu0 0
        %1004 = vmatprep.subr.bf16.mxu0 0
        %1005 = vmatpush1.bf16.xpose.msra.mxu0 0
        %1006 = vmatprep.subr.bf16.mxu0 0
        %1007 = vmatpush1.bf16.xpose.msra.mxu0 0
        %1008 = vmatprep.subr.bf16.mxu0 0
        %1009 = vmatpush1.bf16.xpose.msra.mxu0 0
        %1010 = vmatprep.subr.bf16.mxu0 0
        %1011 = vmatpush1.bf16.xpose.msra.mxu0 0
        %1012 = vmatprep.subr.bf16.mxu0 0
        %1013 = vmatpush1.bf16.xpose.msra.mxu0 0
        %1014 = vmatprep.subr.bf16.mxu0 0
        %1015 = vmatpush1.bf16.xpose.msra.mxu0 0
        %1016 = vmatprep.subr.bf16.mxu0 0
        %1017 = vmatpush1.bf16.xpose.msra.mxu0 0
        %1018 = vmatprep.subr.bf16.mxu0 0
        %1019 = vmatpush1.bf16.xpose.msra.mxu0 0
        %1020 = vmatprep.subr.bf16.mxu0 0
        %1021 = vmatpush1.bf16.xpose.msra.mxu0 0
        %1022 = vmatprep.subr.bf16.mxu0 0
        %1023 = vmatpush1.bf16.xpose.msra.mxu0 0
        %1024 = vmatprep.mubr.bf16.mxu0 0
        %1025 = vmatmul.mubr.bf16.gmra.mrb[0].mxu0 %v987
        %v1026 = vpop.f32.mrb[0].mxu0
        %v1027 = vadd.f32 0.0, %v1026
        %v1028 = vpop.f32.mrb[0].mxu0
        %v1029 = vpop.f32.mrb[0].mxu0
        %v1030 = vpop.f32.mrb[0].mxu0
        %1031 = vdwg.mxu0
        %v1033 = vsel %vm896, %v893, 0
        %1035 = vmatprep.subr.bf16.mxu0 0
        %1036 = vmatpush1.bf16.xpose.msra.mxu0 %v990
        %1037 = vmatprep.subr.bf16.mxu0 0
        %1038 = vmatpush1.bf16.xpose.msra.mxu0 0
        %1039 = vmatprep.subr.bf16.mxu0 0
        %1040 = vmatpush1.bf16.xpose.msra.mxu0 0
        %1041 = vmatprep.subr.bf16.mxu0 0
        %1042 = vmatpush1.bf16.xpose.msra.mxu0 0
        %1043 = vmatprep.subr.bf16.mxu0 0
        %1044 = vmatpush1.bf16.xpose.msra.mxu0 0
        %1045 = vmatprep.subr.bf16.mxu0 0
        %1046 = vmatpush1.bf16.xpose.msra.mxu0 0
        %1047 = vmatprep.subr.bf16.mxu0 0
        %1048 = vmatpush1.bf16.xpose.msra.mxu0 0
        %1049 = vmatprep.subr.bf16.mxu0 0
        %1050 = vmatpush1.bf16.xpose.msra.mxu0 0
        %1051 = vmatprep.subr.bf16.mxu0 0
        %1052 = vmatpush1.bf16.xpose.msra.mxu0 0
        %1053 = vmatprep.subr.bf16.mxu0 0
        %1054 = vmatpush1.bf16.xpose.msra.mxu0 0
        %1055 = vmatprep.subr.bf16.mxu0 0
        %1056 = vmatpush1.bf16.xpose.msra.mxu0 0
        %1057 = vmatprep.subr.bf16.mxu0 0
        %1058 = vmatpush1.bf16.xpose.msra.mxu0 0
        %1059 = vmatprep.subr.bf16.mxu0 0
        %1060 = vmatpush1.bf16.xpose.msra.mxu0 0
        %1061 = vmatprep.subr.bf16.mxu0 0
        %1062 = vmatpush1.bf16.xpose.msra.mxu0 0
        %1063 = vmatprep.subr.bf16.mxu0 0
        %1064 = vmatpush1.bf16.xpose.msra.mxu0 0
        %1065 = vmatprep.subr.bf16.mxu0 0
        %1066 = vmatpush1.bf16.xpose.msra.mxu0 0
        %1067 = vmatprep.mubr.bf16.mxu0 0
        %1068 = vmatmul.mubr.bf16.gmra.mrb[0].mxu0 %v1033
        %v1069 = vpop.f32.mrb[0].mxu0
        %v1070 = vadd.f32 0.0, %v1069
        %v1071 = vpop.f32.mrb[0].mxu0
        %v1072 = vpop.f32.mrb[0].mxu0
        %v1073 = vpop.f32.mrb[0].mxu0
        %1074 = vdwg.mxu0
        %v1075 = vsel %vm889, 1, 0
        %vm1076 = vcmp.eq.s32.totalorder %v1075, 1
        %v1077 = vsel %vm1076, %v938, -1e+30
        %v1078 = vsel %vm1076, %v981, -1e+30
        %v1079 = vsel %vm1076, %v1027, -1e+30
        %v1080 = vsel %vm1076, %v1070, -1e+30
        %vm1081 = vcmask 64512
        %v1082 = vsel %vm1081, %v1077, -inf
        %1083 = vmax.xlane.f32.xlu0 %v1082
        %v1084 = vpop.xlane.xlu0 %1083
        %v1085 = vsel %vm1081, %v1078, -inf
        %1086 = vmax.xlane.f32.xlu0 %v1085
        %v1087 = vpop.xlane.xlu0 %1086
        %v1088 = vsel %vm1081, %v1079, -inf
        %1089 = vmax.xlane.f32.xlu0 %v1088
        %v1090 = vpop.xlane.xlu0 %1089
        %v1091 = vsel %vm1081, %v1080, -inf
        %1092 = vmax.xlane.f32.xlu0 %v1091
        %v1093 = vpop.xlane.xlu0 %1092
        %v1094 = vsub.f32 %v1077, %v1084
        %v1095 = vsub.f32 %v1078, %v1087
        %v1096 = vsub.f32 %v1079, %v1090
        %v1097 = vsub.f32 %v1080, %v1093
        %v1098 = vmul.f32 %v1094, 1.442695
        %v1099 = vpow.pop %v1098
        %v1100 = vmul.f32 %v1095, 1.442695
        %v1101 = vpow.pop %v1100
        %v1102 = vmul.f32 %v1096, 1.442695
        %v1103 = vpow.pop %v1102
        %v1104 = vmul.f32 %v1097, 1.442695
        %v1105 = vpow.pop %v1104
        %v1106 = vsel %vm1081, %v1099, 0.0
        %1107 = vadd.xlane.f32.xlu0 %v1106
        %v1108 = vpop.xlane.xlu0 %1107
        %v1109 = vsel %vm1081, %v1101, 0.0
        %1110 = vadd.xlane.f32.xlu0 %v1109
        %v1111 = vpop.xlane.xlu0 %1110
        %v1112 = vsel %vm1081, %v1103, 0.0
        %1113 = vadd.xlane.f32.xlu0 %v1112
        %v1114 = vpop.xlane.xlu0 %1113
        %v1115 = vsel %vm1081, %v1105, 0.0
        %1116 = vadd.xlane.f32.xlu0 %v1115
        %v1117 = vpop.xlane.xlu0 %1116
        %v1118 = vrcp.pop %v1108
        %v1119 = vmul.f32 %v1099, %v1118
        %v1120 = vrcp.pop %v1111
        %v1121 = vmul.f32 %v1101, %v1120
        %v1122 = vrcp.pop %v1114
        %v1123 = vmul.f32 %v1103, %v1122
        %v1124 = vrcp.pop %v1117
        %v1125 = vmul.f32 %v1105, %v1124
        %v1126 = vpack.c.bf16 %v1119, %v1119
        %v1127 = vpack.c.bf16 %v1121, %v1121
        %v1128 = vpack.c.bf16 %v1123, %v1123
        %v1129 = vpack.c.bf16 %v1125, %v1125
        %v1130 = vpack.c.bf16 %v788, %v788
        %v1131 = vpack.c.bf16 %v804, %v804
        %1133 = vrot.lane.b32.xlu0 %v1130, 64
        %v1134 = vpop.permute.xlu0 %1133
        %v1136 = vsel %vm1081, %v1126, 0
        %vm1138 = vcmask 1043456
        %v1140 = vsel %vm1138, %v1134, 0
        %1142 = vmatprep.subr.bf16.mxu0 0
        %1143 = vmatpush1.bf16.msra.mxu0 %v1140
        %1144 = vmatprep.subr.bf16.mxu0 0
        %1145 = vmatpush1.bf16.msra.mxu0 0
        %1146 = vmatprep.subr.bf16.mxu0 0
        %1147 = vmatpush1.bf16.msra.mxu0 0
        %1148 = vmatprep.subr.bf16.mxu0 0
        %1149 = vmatpush1.bf16.msra.mxu0 0
        %1150 = vmatprep.subr.bf16.mxu0 0
        %1151 = vmatpush1.bf16.msra.mxu0 0
        %1152 = vmatprep.subr.bf16.mxu0 0
        %1153 = vmatpush1.bf16.msra.mxu0 0
        %1154 = vmatprep.subr.bf16.mxu0 0
        %1155 = vmatpush1.bf16.msra.mxu0 0
        %1156 = vmatprep.subr.bf16.mxu0 0
        %1157 = vmatpush1.bf16.msra.mxu0 0
        %1158 = vmatprep.subr.bf16.mxu0 0
        %1159 = vmatpush1.bf16.msra.mxu0 0
        %1160 = vmatprep.subr.bf16.mxu0 0
        %1161 = vmatpush1.bf16.msra.mxu0 0
        %1162 = vmatprep.subr.bf16.mxu0 0
        %1163 = vmatpush1.bf16.msra.mxu0 0
        %1164 = vmatprep.subr.bf16.mxu0 0
        %1165 = vmatpush1.bf16.msra.mxu0 0
        %1166 = vmatprep.subr.bf16.mxu0 0
        %1167 = vmatpush1.bf16.msra.mxu0 0
        %1168 = vmatprep.subr.bf16.mxu0 0
        %1169 = vmatpush1.bf16.msra.mxu0 0
        %1170 = vmatprep.subr.bf16.mxu0 0
        %1171 = vmatpush1.bf16.msra.mxu0 0
        %1172 = vmatprep.subr.bf16.mxu0 0
        %1173 = vmatpush1.bf16.msra.mxu0 0
        %1174 = vmatprep.mubr.bf16.mxu0 0
        %1175 = vmatmul.mubr.bf16.gmra.mrb[0].mxu0 %v1136
        %v1176 = vpop.f32.mrb[0].mxu0
        %v1177 = vadd.f32 0.0, %v1176
        %v1178 = vpop.f32.mrb[0].mxu0
        %v1179 = vpop.f32.mrb[0].mxu0
        %v1180 = vpop.f32.mrb[0].mxu0
        %1181 = vdwg.mxu0
        %v1183 = vsel %vm1081, %v1127, 0
        %1185 = vmatprep.subr.bf16.mxu0 0
        %1186 = vmatpush1.bf16.msra.mxu0 %v1140
        %1187 = vmatprep.subr.bf16.mxu0 0
        %1188 = vmatpush1.bf16.msra.mxu0 0
        %1189 = vmatprep.subr.bf16.mxu0 0
        %1190 = vmatpush1.bf16.msra.mxu0 0
        %1191 = vmatprep.subr.bf16.mxu0 0
        %1192 = vmatpush1.bf16.msra.mxu0 0
        %1193 = vmatprep.subr.bf16.mxu0 0
        %1194 = vmatpush1.bf16.msra.mxu0 0
        %1195 = vmatprep.subr.bf16.mxu0 0
        %1196 = vmatpush1.bf16.msra.mxu0 0
        %1197 = vmatprep.subr.bf16.mxu0 0
        %1198 = vmatpush1.bf16.msra.mxu0 0
        %1199 = vmatprep.subr.bf16.mxu0 0
        %1200 = vmatpush1.bf16.msra.mxu0 0
        %1201 = vmatprep.subr.bf16.mxu0 0
        %1202 = vmatpush1.bf16.msra.mxu0 0
        %1203 = vmatprep.subr.bf16.mxu0 0
        %1204 = vmatpush1.bf16.msra.mxu0 0
        %1205 = vmatprep.subr.bf16.mxu0 0
        %1206 = vmatpush1.bf16.msra.mxu0 0
        %1207 = vmatprep.subr.bf16.mxu0 0
        %1208 = vmatpush1.bf16.msra.mxu0 0
        %1209 = vmatprep.subr.bf16.mxu0 0
        %1210 = vmatpush1.bf16.msra.mxu0 0
        %1211 = vmatprep.subr.bf16.mxu0 0
        %1212 = vmatpush1.bf16.msra.mxu0 0
        %1213 = vmatprep.subr.bf16.mxu0 0
        %1214 = vmatpush1.bf16.msra.mxu0 0
        %1215 = vmatprep.subr.bf16.mxu0 0
        %1216 = vmatpush1.bf16.msra.mxu0 0
        %1217 = vmatprep.mubr.bf16.mxu0 0
        %1218 = vmatmul.mubr.bf16.gmra.mrb[0].mxu0 %v1183
        %v1219 = vpop.f32.mrb[0].mxu0
        %v1220 = vadd.f32 0.0, %v1219
        %v1221 = vpop.f32.mrb[0].mxu0
        %v1222 = vpop.f32.mrb[0].mxu0
        %v1223 = vpop.f32.mrb[0].mxu0
        %1224 = vdwg.mxu0
        %1226 = vrot.lane.b32.xlu0 %v1131, 64
        %v1227 = vpop.permute.xlu0 %1226
        %v1229 = vsel %vm1081, %v1128, 0
        %v1232 = vsel %vm1138, %v1227, 0
        %1234 = vmatprep.subr.bf16.mxu0 0
        %1235 = vmatpush1.bf16.msra.mxu0 %v1232
        %1236 = vmatprep.subr.bf16.mxu0 0
        %1237 = vmatpush1.bf16.msra.mxu0 0
        %1238 = vmatprep.subr.bf16.mxu0 0
        %1239 = vmatpush1.bf16.msra.mxu0 0
        %1240 = vmatprep.subr.bf16.mxu0 0
        %1241 = vmatpush1.bf16.msra.mxu0 0
        %1242 = vmatprep.subr.bf16.mxu0 0
        %1243 = vmatpush1.bf16.msra.mxu0 0
        %1244 = vmatprep.subr.bf16.mxu0 0
        %1245 = vmatpush1.bf16.msra.mxu0 0
        %1246 = vmatprep.subr.bf16.mxu0 0
        %1247 = vmatpush1.bf16.msra.mxu0 0
        %1248 = vmatprep.subr.bf16.mxu0 0
        %1249 = vmatpush1.bf16.msra.mxu0 0
        %1250 = vmatprep.subr.bf16.mxu0 0
        %1251 = vmatpush1.bf16.msra.mxu0 0
        %1252 = vmatprep.subr.bf16.mxu0 0
        %1253 = vmatpush1.bf16.msra.mxu0 0
        %1254 = vmatprep.subr.bf16.mxu0 0
        %1255 = vmatpush1.bf16.msra.mxu0 0
        %1256 = vmatprep.subr.bf16.mxu0 0
        %1257 = vmatpush1.bf16.msra.mxu0 0
        %1258 = vmatprep.subr.bf16.mxu0 0
        %1259 = vmatpush1.bf16.msra.mxu0 0
        %1260 = vmatprep.subr.bf16.mxu0 0
        %1261 = vmatpush1.bf16.msra.mxu0 0
        %1262 = vmatprep.subr.bf16.mxu0 0
        %1263 = vmatpush1.bf16.msra.mxu0 0
        %1264 = vmatprep.subr.bf16.mxu0 0
        %1265 = vmatpush1.bf16.msra.mxu0 0
        %1266 = vmatprep.mubr.bf16.mxu0 0
        %1267 = vmatmul.mubr.bf16.gmra.mrb[0].mxu0 %v1229
        %v1268 = vpop.f32.mrb[0].mxu0
        %v1269 = vadd.f32 0.0, %v1268
        %v1270 = vpop.f32.mrb[0].mxu0
        %v1271 = vpop.f32.mrb[0].mxu0
        %v1272 = vpop.f32.mrb[0].mxu0
        %1273 = vdwg.mxu0
        %v1275 = vsel %vm1081, %v1129, 0
        %1277 = vmatprep.subr.bf16.mxu0 0
        %1278 = vmatpush1.bf16.msra.mxu0 %v1232
        %1279 = vmatprep.subr.bf16.mxu0 0
        %1280 = vmatpush1.bf16.msra.mxu0 0
        %1281 = vmatprep.subr.bf16.mxu0 0
        %1282 = vmatpush1.bf16.msra.mxu0 0
        %1283 = vmatprep.subr.bf16.mxu0 0
        %1284 = vmatpush1.bf16.msra.mxu0 0
        %1285 = vmatprep.subr.bf16.mxu0 0
        %1286 = vmatpush1.bf16.msra.mxu0 0
        %1287 = vmatprep.subr.bf16.mxu0 0
        %1288 = vmatpush1.bf16.msra.mxu0 0
        %1289 = vmatprep.subr.bf16.mxu0 0
        %1290 = vmatpush1.bf16.msra.mxu0 0
        %1291 = vmatprep.subr.bf16.mxu0 0
        %1292 = vmatpush1.bf16.msra.mxu0 0
        %1293 = vmatprep.subr.bf16.mxu0 0
        %1294 = vmatpush1.bf16.msra.mxu0 0
        %1295 = vmatprep.subr.bf16.mxu0 0
        %1296 = vmatpush1.bf16.msra.mxu0 0
        %1297 = vmatprep.subr.bf16.mxu0 0
        %1298 = vmatpush1.bf16.msra.mxu0 0
        %1299 = vmatprep.subr.bf16.mxu0 0
        %1300 = vmatpush1.bf16.msra.mxu0 0
        %1301 = vmatprep.subr.bf16.mxu0 0
        %1302 = vmatpush1.bf16.msra.mxu0 0
        %1303 = vmatprep.subr.bf16.mxu0 0
        %1304 = vmatpush1.bf16.msra.mxu0 0
        %1305 = vmatprep.subr.bf16.mxu0 0
        %1306 = vmatpush1.bf16.msra.mxu0 0
        %1307 = vmatprep.subr.bf16.mxu0 0
        %1308 = vmatpush1.bf16.msra.mxu0 0
        %1309 = vmatprep.mubr.bf16.mxu0 0
        %1310 = vmatmul.mubr.bf16.gmra.mrb[0].mxu0 %v1275
        %v1311 = vpop.f32.mrb[0].mxu0
        %v1312 = vadd.f32 0.0, %v1311
        %v1313 = vpop.f32.mrb[0].mxu0
        %v1314 = vpop.f32.mrb[0].mxu0
        %v1315 = vpop.f32.mrb[0].mxu0
        %1316 = vdwg.mxu0
        %1318 = vrot.lane.b32.xlu0 %v1220, 32
        %v1319 = vpop.permute.xlu0 %1318
        %1322 = vrot.lane.b32.xlu0 %v1269, 64
        %v1323 = vpop.permute.xlu0 %1322
        %1326 = vrot.lane.b32.xlu0 %v1312, 96
        %v1327 = vpop.permute.xlu0 %1326
        %v1329 = vsel %vm896, %v1177, %v1319
        %vm1330 = vcmask 523264
        %v1331 = vsel %vm1330, %v1329, %v1323
        %vm1332 = vcmask 785408
        %v1333 = vsel %vm1332, %v1331, %v1327
        %v1334 = vld [vmem:[%s614] sm:$0xf]
        %v1335 = vld [vmem:[%s614 + $0x4] sm:$0xf]
        %v1336 = vld [vmem:[%s614 + $0x8] sm:$0xf]
        %v1337 = vld [vmem:[%s614 + $0xc] sm:$0xf]
        %v1338 = vld [vmem:[%s614 + $0x10] sm:$0xf]
        %v1339 = vld [vmem:[%s614 + $0x14] sm:$0xf]
        %v1340 = vld [vmem:[%s614 + $0x18] sm:$0xf]
        %v1341 = vld [vmem:[%s614 + $0x1c] sm:$0xf]
        %v1342 = vld [vmem:[%s614 + $0x20] sm:$0xf]
        %v1343 = vld [vmem:[%s614 + $0x24] sm:$0xf]
        %v1344 = vld [vmem:[%s614 + $0x28] sm:$0xf]
        %v1345 = vld [vmem:[%s614 + $0x2c] sm:$0xf]
        %v1346 = vld [vmem:[%s614 + $0x30] sm:$0xf]
        %v1347 = vld [vmem:[%s614 + $0x34] sm:$0xf]
        %v1348 = vld [vmem:[%s614 + $0x38] sm:$0xf]
        %v1349 = vld [vmem:[%s614 + $0x3c] sm:$0xf]
        %v1350 = vpack.c.bf16 %v1333, %v1333
        %v1367 = vunpack.c.l.b16 %v1334
        %v1368 = vunpack.c.l.b16 %v1335
        %v1369 = vunpack.c.l.b16 %v1336
        %v1370 = vunpack.c.l.b16 %v1337
        %v1371 = vunpack.c.l.b16 %v1338
        %v1372 = vunpack.c.l.b16 %v1339
        %v1373 = vunpack.c.l.b16 %v1340
        %v1374 = vunpack.c.l.b16 %v1341
        %v1375 = vunpack.c.l.b16 %v1342
        %v1376 = vunpack.c.l.b16 %v1343
        %v1377 = vunpack.c.l.b16 %v1344
        %v1378 = vunpack.c.l.b16 %v1345
        %v1379 = vunpack.c.l.b16 %v1346
        %v1380 = vunpack.c.l.b16 %v1347
        %v1381 = vunpack.c.l.b16 %v1348
        %v1382 = vunpack.c.l.b16 %v1349
        %v1383 = vpack.c.b16 %v1368, %v1367
        %v1384 = vpack.c.b16 %v1370, %v1369
        %v1385 = vpack.c.b16 %v1372, %v1371
        %v1386 = vpack.c.b16 %v1374, %v1373
        %v1387 = vpack.c.b16 %v1376, %v1375
        %v1388 = vpack.c.b16 %v1378, %v1377
        %v1389 = vpack.c.b16 %v1380, %v1379
        %v1390 = vpack.c.b16 %v1382, %v1381
        %1399 = vmatprep.subr.bf16.mxu0 0
        %1400 = vmatpush1.bf16.msra.mxu0 %v1383
        %1401 = vmatprep.subr.bf16.mxu0 0
        %1402 = vmatpush1.bf16.msra.mxu0 %v1384
        %1403 = vmatprep.subr.bf16.mxu0 0
        %1404 = vmatpush1.bf16.msra.mxu0 %v1385
        %1405 = vmatprep.subr.bf16.mxu0 0
        %1406 = vmatpush1.bf16.msra.mxu0 %v1386
        %1407 = vmatprep.subr.bf16.mxu0 0
        %1408 = vmatpush1.bf16.msra.mxu0 %v1387
        %1409 = vmatprep.subr.bf16.mxu0 0
        %1410 = vmatpush1.bf16.msra.mxu0 %v1388
        %1411 = vmatprep.subr.bf16.mxu0 0
        %1412 = vmatpush1.bf16.msra.mxu0 %v1389
        %1413 = vmatprep.subr.bf16.mxu0 0
        %1414 = vmatpush1.bf16.msra.mxu0 %v1390
        %1415 = vmatprep.subr.bf16.mxu0 0
        %1416 = vmatpush1.bf16.msra.mxu0 0
        %1417 = vmatprep.subr.bf16.mxu0 0
        %1418 = vmatpush1.bf16.msra.mxu0 0
        %1419 = vmatprep.subr.bf16.mxu0 0
        %1420 = vmatpush1.bf16.msra.mxu0 0
        %1421 = vmatprep.subr.bf16.mxu0 0
        %1422 = vmatpush1.bf16.msra.mxu0 0
        %1423 = vmatprep.subr.bf16.mxu0 0
        %1424 = vmatpush1.bf16.msra.mxu0 0
        %1425 = vmatprep.subr.bf16.mxu0 0
        %1426 = vmatpush1.bf16.msra.mxu0 0
        %1427 = vmatprep.subr.bf16.mxu0 0
        %1428 = vmatpush1.bf16.msra.mxu0 0
        %1429 = vmatprep.subr.bf16.mxu0 0
        %1430 = vmatpush1.bf16.msra.mxu0 0
        %1431 = vmatprep.mubr.bf16.mxu0 0
        %1432 = vmatmul.mubr.bf16.gmra.mrb[0].mxu0 %v1350
        %v1433 = vpop.f32.mrb[0].mxu0
        %v1434 = vadd.f32 0.0, %v1433
        %v1435 = vpop.f32.mrb[0].mxu0
        %v1436 = vpop.f32.mrb[0].mxu0
        %v1437 = vpop.f32.mrb[0].mxu0
        %1438 = vdwg.mxu0
        %v1439 = vadd.f32 %v625, %v1434
        %v1440 = vld [vmem:[%s617] sm:$0x1]
        %v1441 = vmul.f32 %v1439, %v1439
        %1442 = vadd.xlane.f32.xlu0 %v1441
        %v1443 = vpop.xlane.xlu0 %1442
        %v1444 = vmul.f32 %v1443, %v630
        %v1445 = vadd.f32 %v1444, 1e-06
        %v1446 = vrsqrt.pop %v1445
        %v1447 = vmul.f32 %v1439, %v1446
        %v1449 = vlaneseq
        %v1450 = vshrl.u32 %v1449, 7
        %v1451 = vsub.s32 0, %v1450
        %v1452 = vrot.slane %v1440, %v1451
        %v1454 = vmul.f32 %v1447, %v1452
        %v1455 = vld [vmem:[%s516] sm:$0xff]
        %v1456 = vld [vmem:[%s516 + $0x8] sm:$0xff]
        %v1457 = vld [vmem:[%s516 + $0x10] sm:$0xff]
        %v1458 = vld [vmem:[%s516 + $0x18] sm:$0xff]
        %v1459 = vld [vmem:[%s516 + $0x20] sm:$0xff]
        %v1460 = vld [vmem:[%s516 + $0x28] sm:$0xff]
        %v1461 = vld [vmem:[%s516 + $0x30] sm:$0xff]
        %v1462 = vld [vmem:[%s516 + $0x38] sm:$0xff]
        %v1463 = vld [vmem:[%s516 + $0x40] sm:$0xff]
        %v1464 = vld [vmem:[%s516 + $0x48] sm:$0xff]
        %v1465 = vld [vmem:[%s516 + $0x50] sm:$0xff]
        %v1466 = vld [vmem:[%s516 + $0x58] sm:$0xff]
        %v1467 = vld [vmem:[%s516 + $0x60] sm:$0xff]
        %v1468 = vld [vmem:[%s516 + $0x68] sm:$0xff]
        %v1469 = vld [vmem:[%s516 + $0x70] sm:$0xff]
        %v1470 = vld [vmem:[%s516 + $0x78] sm:$0xff]
        %v1471 = vld [vmem:[%s516 + $0x80] sm:$0xff]
        %v1472 = vld [vmem:[%s516 + $0x88] sm:$0xff]
        %v1473 = vld [vmem:[%s516 + $0x90] sm:$0xff]
        %v1474 = vld [vmem:[%s516 + $0x98] sm:$0xff]
        %v1475 = vld [vmem:[%s516 + $0xa0] sm:$0xff]
        %v1476 = vld [vmem:[%s516 + $0xa8] sm:$0xff]
        %v1477 = vld [vmem:[%s516 + $0xb0] sm:$0xff]
        %v1478 = vld [vmem:[%s516 + $0xb8] sm:$0xff]
        %v1479 = vld [vmem:[%s516 + $0xc0] sm:$0xff]
        %v1480 = vld [vmem:[%s516 + $0xc8] sm:$0xff]
        %v1481 = vld [vmem:[%s516 + $0xd0] sm:$0xff]
        %v1482 = vld [vmem:[%s516 + $0xd8] sm:$0xff]
        %v1483 = vld [vmem:[%s516 + $0xe0] sm:$0xff]
        %v1484 = vld [vmem:[%s516 + $0xe8] sm:$0xff]
        %v1485 = vld [vmem:[%s516 + $0xf0] sm:$0xff]
        %v1486 = vld [vmem:[%s516 + $0xf8] sm:$0xff]
        %v1487 = vpack.c.bf16 %v1454, %v1454
        %v1520 = vunpack.c.l.b16 %v1455
        %v1521 = vunpack.c.h.b16 %v1455
        %v1522 = vunpack.c.l.b16 %v1456
        %v1523 = vunpack.c.h.b16 %v1456
        %v1524 = vunpack.c.l.b16 %v1457
        %v1525 = vunpack.c.h.b16 %v1457
        %v1526 = vunpack.c.l.b16 %v1458
        %v1527 = vunpack.c.h.b16 %v1458
        %v1528 = vunpack.c.l.b16 %v1459
        %v1529 = vunpack.c.h.b16 %v1459
        %v1530 = vunpack.c.l.b16 %v1460
        %v1531 = vunpack.c.h.b16 %v1460
        %v1532 = vunpack.c.l.b16 %v1461
        %v1533 = vunpack.c.h.b16 %v1461
        %v1534 = vunpack.c.l.b16 %v1462
        %v1535 = vunpack.c.h.b16 %v1462
        %v1536 = vunpack.c.l.b16 %v1463
        %v1537 = vunpack.c.h.b16 %v1463
        %v1538 = vunpack.c.l.b16 %v1464
        %v1539 = vunpack.c.h.b16 %v1464
        %v1540 = vunpack.c.l.b16 %v1465
        %v1541 = vunpack.c.h.b16 %v1465
        %v1542 = vunpack.c.l.b16 %v1466
        %v1543 = vunpack.c.h.b16 %v1466
        %v1544 = vunpack.c.l.b16 %v1467
        %v1545 = vunpack.c.h.b16 %v1467
        %v1546 = vunpack.c.l.b16 %v1468
        %v1547 = vunpack.c.h.b16 %v1468
        %v1548 = vunpack.c.l.b16 %v1469
        %v1549 = vunpack.c.h.b16 %v1469
        %v1550 = vunpack.c.l.b16 %v1470
        %v1551 = vunpack.c.h.b16 %v1470
        %v1552 = vunpack.c.l.b16 %v1471
        %v1553 = vunpack.c.h.b16 %v1471
        %v1554 = vunpack.c.l.b16 %v1472
        %v1555 = vunpack.c.h.b16 %v1472
        %v1556 = vunpack.c.l.b16 %v1473
        %v1557 = vunpack.c.h.b16 %v1473
        %v1558 = vunpack.c.l.b16 %v1474
        %v1559 = vunpack.c.h.b16 %v1474
        %v1560 = vunpack.c.l.b16 %v1475
        %v1561 = vunpack.c.h.b16 %v1475
        %v1562 = vunpack.c.l.b16 %v1476
        %v1563 = vunpack.c.h.b16 %v1476
        %v1564 = vunpack.c.l.b16 %v1477
        %v1565 = vunpack.c.h.b16 %v1477
        %v1566 = vunpack.c.l.b16 %v1478
        %v1567 = vunpack.c.h.b16 %v1478
        %v1568 = vunpack.c.l.b16 %v1479
        %v1569 = vunpack.c.h.b16 %v1479
        %v1570 = vunpack.c.l.b16 %v1480
        %v1571 = vunpack.c.h.b16 %v1480
        %v1572 = vunpack.c.l.b16 %v1481
        %v1573 = vunpack.c.h.b16 %v1481
        %v1574 = vunpack.c.l.b16 %v1482
        %v1575 = vunpack.c.h.b16 %v1482
        %v1576 = vunpack.c.l.b16 %v1483
        %v1577 = vunpack.c.h.b16 %v1483
        %v1578 = vunpack.c.l.b16 %v1484
        %v1579 = vunpack.c.h.b16 %v1484
        %v1580 = vunpack.c.l.b16 %v1485
        %v1581 = vunpack.c.h.b16 %v1485
        %v1582 = vunpack.c.l.b16 %v1486
        %v1583 = vunpack.c.h.b16 %v1486
        %v1584 = vpack.c.b16 %v1524, %v1520
        %v1585 = vpack.c.b16 %v1525, %v1521
        %v1586 = vpack.c.b16 %v1526, %v1522
        %v1587 = vpack.c.b16 %v1527, %v1523
        %v1588 = vpack.c.b16 %v1532, %v1528
        %v1589 = vpack.c.b16 %v1533, %v1529
        %v1590 = vpack.c.b16 %v1534, %v1530
        %v1591 = vpack.c.b16 %v1535, %v1531
        %v1592 = vpack.c.b16 %v1540, %v1536
        %v1593 = vpack.c.b16 %v1541, %v1537
        %v1594 = vpack.c.b16 %v1542, %v1538
        %v1595 = vpack.c.b16 %v1543, %v1539
        %v1596 = vpack.c.b16 %v1548, %v1544
        %v1597 = vpack.c.b16 %v1549, %v1545
        %v1598 = vpack.c.b16 %v1550, %v1546
        %v1599 = vpack.c.b16 %v1551, %v1547
        %v1600 = vpack.c.b16 %v1556, %v1552
        %v1601 = vpack.c.b16 %v1557, %v1553
        %v1602 = vpack.c.b16 %v1558, %v1554
        %v1603 = vpack.c.b16 %v1559, %v1555
        %v1604 = vpack.c.b16 %v1564, %v1560
        %v1605 = vpack.c.b16 %v1565, %v1561
        %v1606 = vpack.c.b16 %v1566, %v1562
        %v1607 = vpack.c.b16 %v1567, %v1563
        %v1608 = vpack.c.b16 %v1572, %v1568
        %v1609 = vpack.c.b16 %v1573, %v1569
        %v1610 = vpack.c.b16 %v1574, %v1570
        %v1611 = vpack.c.b16 %v1575, %v1571
        %v1612 = vpack.c.b16 %v1580, %v1576
        %v1613 = vpack.c.b16 %v1581, %v1577
        %v1614 = vpack.c.b16 %v1582, %v1578
        %v1615 = vpack.c.b16 %v1583, %v1579
        %1648 = vmatprep.subr.bf16.mxu0 %v1585
        %1649 = vmatpush1.bf16.msra.mxu0 %v1584
        %1650 = vmatprep.subr.bf16.mxu0 %v1589
        %1651 = vmatpush1.bf16.msra.mxu0 %v1588
        %1652 = vmatprep.subr.bf16.mxu0 %v1593
        %1653 = vmatpush1.bf16.msra.mxu0 %v1592
        %1654 = vmatprep.subr.bf16.mxu0 %v1597
        %1655 = vmatpush1.bf16.msra.mxu0 %v1596
        %1656 = vmatprep.subr.bf16.mxu0 %v1601
        %1657 = vmatpush1.bf16.msra.mxu0 %v1600
        %1658 = vmatprep.subr.bf16.mxu0 %v1605
        %1659 = vmatpush1.bf16.msra.mxu0 %v1604
        %1660 = vmatprep.subr.bf16.mxu0 %v1609
        %1661 = vmatpush1.bf16.msra.mxu0 %v1608
        %1662 = vmatprep.subr.bf16.mxu0 %v1613
        %1663 = vmatpush1.bf16.msra.mxu0 %v1612
        %1664 = vmatprep.subr.bf16.mxu0 0
        %1665 = vmatpush1.bf16.msra.mxu0 0
        %1666 = vmatprep.subr.bf16.mxu0 0
        %1667 = vmatpush1.bf16.msra.mxu0 0
        %1668 = vmatprep.subr.bf16.mxu0 0
        %1669 = vmatpush1.bf16.msra.mxu0 0
        %1670 = vmatprep.subr.bf16.mxu0 0
        %1671 = vmatpush1.bf16.msra.mxu0 0
        %1672 = vmatprep.subr.bf16.mxu0 0
        %1673 = vmatpush1.bf16.msra.mxu0 0
        %1674 = vmatprep.subr.bf16.mxu0 0
        %1675 = vmatpush1.bf16.msra.mxu0 0
        %1676 = vmatprep.subr.bf16.mxu0 0
        %1677 = vmatpush1.bf16.msra.mxu0 0
        %1678 = vmatprep.subr.bf16.mxu0 0
        %1679 = vmatpush1.bf16.msra.mxu0 0
        %1680 = vmatprep.mubr.bf16.mxu0 0
        %1681 = vmatmul.mubr.bf16.gmra.mrb[0].mxu0 %v1487
        %v1682 = vpop.f32.mrb[0].mxu0
        %v1683 = vadd.f32 0.0, %v1682
        %v1684 = vpop.f32.mrb[0].mxu0
        %v1685 = vadd.f32 0.0, %v1684
        %v1686 = vpop.f32.mrb[0].mxu0
        %v1687 = vpop.f32.mrb[0].mxu0
        %1688 = vdwg.mxu0
        %1689 = vmatprep.subr.bf16.mxu0 %v1587
        %1690 = vmatpush1.bf16.msra.mxu0 %v1586
        %1691 = vmatprep.subr.bf16.mxu0 %v1591
        %1692 = vmatpush1.bf16.msra.mxu0 %v1590
        %1693 = vmatprep.subr.bf16.mxu0 %v1595
        %1694 = vmatpush1.bf16.msra.mxu0 %v1594
        %1695 = vmatprep.subr.bf16.mxu0 %v1599
        %1696 = vmatpush1.bf16.msra.mxu0 %v1598
        %1697 = vmatprep.subr.bf16.mxu0 %v1603
        %1698 = vmatpush1.bf16.msra.mxu0 %v1602
        %1699 = vmatprep.subr.bf16.mxu0 %v1607
        %1700 = vmatpush1.bf16.msra.mxu0 %v1606
        %1701 = vmatprep.subr.bf16.mxu0 %v1611
        %1702 = vmatpush1.bf16.msra.mxu0 %v1610
        %1703 = vmatprep.subr.bf16.mxu0 %v1615
        %1704 = vmatpush1.bf16.msra.mxu0 %v1614
        %1705 = vmatprep.subr.bf16.mxu0 0
        %1706 = vmatpush1.bf16.msra.mxu0 0
        %1707 = vmatprep.subr.bf16.mxu0 0
        %1708 = vmatpush1.bf16.msra.mxu0 0
        %1709 = vmatprep.subr.bf16.mxu0 0
        %1710 = vmatpush1.bf16.msra.mxu0 0
        %1711 = vmatprep.subr.bf16.mxu0 0
        %1712 = vmatpush1.bf16.msra.mxu0 0
        %1713 = vmatprep.subr.bf16.mxu0 0
        %1714 = vmatpush1.bf16.msra.mxu0 0
        %1715 = vmatprep.subr.bf16.mxu0 0
        %1716 = vmatpush1.bf16.msra.mxu0 0
        %1717 = vmatprep.subr.bf16.mxu0 0
        %1718 = vmatpush1.bf16.msra.mxu0 0
        %1719 = vmatprep.subr.bf16.mxu0 0
        %1720 = vmatpush1.bf16.msra.mxu0 0
        %1721 = vmatprep.mubr.bf16.mxu0 0
        %1722 = vmatmul.mubr.bf16.gmra.mrb[0].mxu0 %v1487
        %v1723 = vpop.f32.mrb[0].mxu0
        %v1724 = vadd.f32 0.0, %v1723
        %v1725 = vpop.f32.mrb[0].mxu0
        %v1726 = vadd.f32 0.0, %v1725
        %v1727 = vpop.f32.mrb[0].mxu0
        %v1728 = vpop.f32.mrb[0].mxu0
        %1729 = vdwg.mxu0
        %v1730 = vxor.u32 %v1683, 2147483648
        %v1731 = vxor.u32 %v1685, 2147483648
        %v1732 = vmul.f32 %v1730, 1.442695
        %v1733 = vpow.pop %v1732
        %v1734 = vmul.f32 %v1731, 1.442695
        %v1735 = vpow.pop %v1734
        %v1736 = vadd.f32 %v1733, 1.0
        %v1737 = vadd.f32 %v1735, 1.0
        %v1738 = vrcp.pop %v1736
        %v1739 = vmul.f32 1.0, %v1738
        %v1740 = vrcp.pop %v1737
        %v1741 = vmul.f32 1.0, %v1740
        %v1742 = vmul.f32 %v1683, %v1739
        %v1743 = vmul.f32 %v1685, %v1741
        %v1744 = vmul.f32 %v1742, %v1724
        %v1745 = vmul.f32 %v1743, %v1726
        %v1746 = vld [vmem:[%s525] sm:$0xf]
        %v1747 = vld [vmem:[%s525 + $0x4] sm:$0xf]
        %v1748 = vld [vmem:[%s525 + $0x8] sm:$0xf]
        %v1749 = vld [vmem:[%s525 + $0xc] sm:$0xf]
        %v1750 = vld [vmem:[%s525 + $0x10] sm:$0xf]
        %v1751 = vld [vmem:[%s525 + $0x14] sm:$0xf]
        %v1752 = vld [vmem:[%s525 + $0x18] sm:$0xf]
        %v1753 = vld [vmem:[%s525 + $0x1c] sm:$0xf]
        %v1754 = vld [vmem:[%s525 + $0x20] sm:$0xf]
        %v1755 = vld [vmem:[%s525 + $0x24] sm:$0xf]
        %v1756 = vld [vmem:[%s525 + $0x28] sm:$0xf]
        %v1757 = vld [vmem:[%s525 + $0x2c] sm:$0xf]
        %v1758 = vld [vmem:[%s525 + $0x30] sm:$0xf]
        %v1759 = vld [vmem:[%s525 + $0x34] sm:$0xf]
        %v1760 = vld [vmem:[%s525 + $0x38] sm:$0xf]
        %v1761 = vld [vmem:[%s525 + $0x3c] sm:$0xf]
        %v1762 = vld [vmem:[%s525 + $0x40] sm:$0xf]
        %v1763 = vld [vmem:[%s525 + $0x44] sm:$0xf]
        %v1764 = vld [vmem:[%s525 + $0x48] sm:$0xf]
        %v1765 = vld [vmem:[%s525 + $0x4c] sm:$0xf]
        %v1766 = vld [vmem:[%s525 + $0x50] sm:$0xf]
        %v1767 = vld [vmem:[%s525 + $0x54] sm:$0xf]
        %v1768 = vld [vmem:[%s525 + $0x58] sm:$0xf]
        %v1769 = vld [vmem:[%s525 + $0x5c] sm:$0xf]
        %v1770 = vld [vmem:[%s525 + $0x60] sm:$0xf]
        %v1771 = vld [vmem:[%s525 + $0x64] sm:$0xf]
        %v1772 = vld [vmem:[%s525 + $0x68] sm:$0xf]
        %v1773 = vld [vmem:[%s525 + $0x6c] sm:$0xf]
        %v1774 = vld [vmem:[%s525 + $0x70] sm:$0xf]
        %v1775 = vld [vmem:[%s525 + $0x74] sm:$0xf]
        %v1776 = vld [vmem:[%s525 + $0x78] sm:$0xf]
        %v1777 = vld [vmem:[%s525 + $0x7c] sm:$0xf]
        %v1778 = vpack.c.bf16 %v1744, %v1744
        %v1779 = vpack.c.bf16 %v1745, %v1745
        %v1812 = vunpack.c.l.b16 %v1746
        %v1813 = vunpack.c.l.b16 %v1747
        %v1814 = vunpack.c.l.b16 %v1748
        %v1815 = vunpack.c.l.b16 %v1749
        %v1816 = vunpack.c.l.b16 %v1750
        %v1817 = vunpack.c.l.b16 %v1751
        %v1818 = vunpack.c.l.b16 %v1752
        %v1819 = vunpack.c.l.b16 %v1753
        %v1820 = vunpack.c.l.b16 %v1754
        %v1821 = vunpack.c.l.b16 %v1755
        %v1822 = vunpack.c.l.b16 %v1756
        %v1823 = vunpack.c.l.b16 %v1757
        %v1824 = vunpack.c.l.b16 %v1758
        %v1825 = vunpack.c.l.b16 %v1759
        %v1826 = vunpack.c.l.b16 %v1760
        %v1827 = vunpack.c.l.b16 %v1761
        %v1828 = vunpack.c.l.b16 %v1762
        %v1829 = vunpack.c.l.b16 %v1763
        %v1830 = vunpack.c.l.b16 %v1764
        %v1831 = vunpack.c.l.b16 %v1765
        %v1832 = vunpack.c.l.b16 %v1766
        %v1833 = vunpack.c.l.b16 %v1767
        %v1834 = vunpack.c.l.b16 %v1768
        %v1835 = vunpack.c.l.b16 %v1769
        %v1836 = vunpack.c.l.b16 %v1770
        %v1837 = vunpack.c.l.b16 %v1771
        %v1838 = vunpack.c.l.b16 %v1772
        %v1839 = vunpack.c.l.b16 %v1773
        %v1840 = vunpack.c.l.b16 %v1774
        %v1841 = vunpack.c.l.b16 %v1775
        %v1842 = vunpack.c.l.b16 %v1776
        %v1843 = vunpack.c.l.b16 %v1777
        %v1844 = vpack.c.b16 %v1813, %v1812
        %v1845 = vpack.c.b16 %v1815, %v1814
        %v1846 = vpack.c.b16 %v1817, %v1816
        %v1847 = vpack.c.b16 %v1819, %v1818
        %v1848 = vpack.c.b16 %v1821, %v1820
        %v1849 = vpack.c.b16 %v1823, %v1822
        %v1850 = vpack.c.b16 %v1825, %v1824
        %v1851 = vpack.c.b16 %v1827, %v1826
        %v1852 = vpack.c.b16 %v1829, %v1828
        %v1853 = vpack.c.b16 %v1831, %v1830
        %v1854 = vpack.c.b16 %v1833, %v1832
        %v1855 = vpack.c.b16 %v1835, %v1834
        %v1856 = vpack.c.b16 %v1837, %v1836
        %v1857 = vpack.c.b16 %v1839, %v1838
        %v1858 = vpack.c.b16 %v1841, %v1840
        %v1859 = vpack.c.b16 %v1843, %v1842
        %1876 = vmatprep.subr.bf16.mxu0 0
        %1877 = vmatpush1.bf16.msra.mxu0 %v1844
        %1878 = vmatprep.subr.bf16.mxu0 0
        %1879 = vmatpush1.bf16.msra.mxu0 %v1845
        %1880 = vmatprep.subr.bf16.mxu0 0
        %1881 = vmatpush1.bf16.msra.mxu0 %v1846
        %1882 = vmatprep.subr.bf16.mxu0 0
        %1883 = vmatpush1.bf16.msra.mxu0 %v1847
        %1884 = vmatprep.subr.bf16.mxu0 0
        %1885 = vmatpush1.bf16.msra.mxu0 %v1848
        %1886 = vmatprep.subr.bf16.mxu0 0
        %1887 = vmatpush1.bf16.msra.mxu0 %v1849
        %1888 = vmatprep.subr.bf16.mxu0 0
        %1889 = vmatpush1.bf16.msra.mxu0 %v1850
        %1890 = vmatprep.subr.bf16.mxu0 0
        %1891 = vmatpush1.bf16.msra.mxu0 %v1851
        %1892 = vmatprep.subr.bf16.mxu0 0
        %1893 = vmatpush1.bf16.msra.mxu0 %v1852
        %1894 = vmatprep.subr.bf16.mxu0 0
        %1895 = vmatpush1.bf16.msra.mxu0 %v1853
        %1896 = vmatprep.subr.bf16.mxu0 0
        %1897 = vmatpush1.bf16.msra.mxu0 %v1854
        %1898 = vmatprep.subr.bf16.mxu0 0
        %1899 = vmatpush1.bf16.msra.mxu0 %v1855
        %1900 = vmatprep.subr.bf16.mxu0 0
        %1901 = vmatpush1.bf16.msra.mxu0 %v1856
        %1902 = vmatprep.subr.bf16.mxu0 0
        %1903 = vmatpush1.bf16.msra.mxu0 %v1857
        %1904 = vmatprep.subr.bf16.mxu0 0
        %1905 = vmatpush1.bf16.msra.mxu0 %v1858
        %1906 = vmatprep.subr.bf16.mxu0 0
        %1907 = vmatpush1.bf16.msra.mxu0 %v1859
        %1908 = vmatprep.mubr.bf16.mxu0 %v1779
        %1909 = vmatmul.mubr.bf16.gmra.mrb[0].mxu0 %v1778
        %v1910 = vpop.f32.mrb[0].mxu0
        %v1911 = vadd.f32 0.0, %v1910
        %v1912 = vpop.f32.mrb[0].mxu0
        %v1913 = vpop.f32.mrb[0].mxu0
        %v1914 = vpop.f32.mrb[0].mxu0
        %1915 = vdwg.mxu0
        %v1916 = vadd.f32 %v1439, %v1911
        %1917 = vst [vmem:[#allocation2] sm:$0xff] %v1916
        %p1918 = scmp.eq.s32.totalorder %s38, 1
        // Predicated region
        $region89: #{transformer_forward.1} parent=67 // pred_check
          %p1919 = pneg %p1918
        $region90: #{transformer_forward.1} parent=67 // pred_check_branch
          %1921 = sbr.rel (%p1919) target = $region92
        $region91: #{transformer_forward.1} parent=67 // pred_region
          %v1922 = vld [vmem:[%s10] sm:$0x1]
          %v1923 = vmul.f32 %v1916, %v1916
          %1924 = vadd.xlane.f32.xlu0 %v1923
          %v1925 = vpop.xlane.xlu0 %1924
          %v1926 = vmul.f32 %v1925, %v630
          %v1927 = vadd.f32 %v1926, 1e-06
          %v1928 = vrsqrt.pop %v1927
          %v1929 = vmul.f32 %v1916, %v1928
          %v1931 = vlaneseq
          %v1932 = vshrl.u32 %v1931, 7
          %v1933 = vsub.s32 0, %v1932
          %v1934 = vrot.slane %v1922, %v1933
          %v1936 = vmul.f32 %v1929, %v1934
          %v1937 = vld [vmem:[#allocation9] sm:$0xf]
          %v1938 = vld [vmem:[#allocation9 + $0x4] sm:$0xf]
          %v1939 = vld [vmem:[#allocation9 + $0x8] sm:$0xf]
          %v1940 = vld [vmem:[#allocation9 + $0xc] sm:$0xf]
          %v1941 = vld [vmem:[#allocation9 + $0x10] sm:$0xf]
          %v1942 = vld [vmem:[#allocation9 + $0x14] sm:$0xf]
          %v1943 = vld [vmem:[#allocation9 + $0x18] sm:$0xf]
          %v1944 = vld [vmem:[#allocation9 + $0x1c] sm:$0xf]
          %v1945 = vld [vmem:[#allocation9 + $0x20] sm:$0xf]
          %v1946 = vld [vmem:[#allocation9 + $0x24] sm:$0xf]
          %v1947 = vld [vmem:[#allocation9 + $0x28] sm:$0xf]
          %v1948 = vld [vmem:[#allocation9 + $0x2c] sm:$0xf]
          %v1949 = vld [vmem:[#allocation9 + $0x30] sm:$0xf]
          %v1950 = vld [vmem:[#allocation9 + $0x34] sm:$0xf]
          %v1951 = vld [vmem:[#allocation9 + $0x38] sm:$0xf]
          %v1952 = vld [vmem:[#allocation9 + $0x3c] sm:$0xf]
          %v1953 = vld [vmem:[#allocation9 + $0x40] sm:$0xf]
          %v1954 = vld [vmem:[#allocation9 + $0x44] sm:$0xf]
          %v1955 = vld [vmem:[#allocation9 + $0x48] sm:$0xf]
          %v1956 = vld [vmem:[#allocation9 + $0x4c] sm:$0xf]
          %v1957 = vld [vmem:[#allocation9 + $0x50] sm:$0xf]
          %v1958 = vld [vmem:[#allocation9 + $0x54] sm:$0xf]
          %v1959 = vld [vmem:[#allocation9 + $0x58] sm:$0xf]
          %v1960 = vld [vmem:[#allocation9 + $0x5c] sm:$0xf]
          %v1961 = vld [vmem:[#allocation9 + $0x60] sm:$0xf]
          %v1962 = vld [vmem:[#allocation9 + $0x64] sm:$0xf]
          %v1963 = vld [vmem:[#allocation9 + $0x68] sm:$0xf]
          %v1964 = vld [vmem:[#allocation9 + $0x6c] sm:$0xf]
          %v1965 = vld [vmem:[#allocation9 + $0x70] sm:$0xf]
          %v1966 = vld [vmem:[#allocation9 + $0x74] sm:$0xf]
          %v1967 = vld [vmem:[#allocation9 + $0x78] sm:$0xf]
          %v1968 = vld [vmem:[#allocation9 + $0x7c] sm:$0xf]
          %v1969 = vld [vmem:[#allocation9 + $0x80] sm:$0xf]
          %v1970 = vld [vmem:[#allocation9 + $0x84] sm:$0xf]
          %v1971 = vld [vmem:[#allocation9 + $0x88] sm:$0xf]
          %v1972 = vld [vmem:[#allocation9 + $0x8c] sm:$0xf]
          %v1973 = vld [vmem:[#allocation9 + $0x90] sm:$0xf]
          %v1974 = vld [vmem:[#allocation9 + $0x94] sm:$0xf]
          %v1975 = vld [vmem:[#allocation9 + $0x98] sm:$0xf]
          %v1976 = vld [vmem:[#allocation9 + $0x9c] sm:$0xf]
          %v1977 = vld [vmem:[#allocation9 + $0xa0] sm:$0xf]
          %v1978 = vld [vmem:[#allocation9 + $0xa4] sm:$0xf]
          %v1979 = vld [vmem:[#allocation9 + $0xa8] sm:$0xf]
          %v1980 = vld [vmem:[#allocation9 + $0xac] sm:$0xf]
          %v1981 = vld [vmem:[#allocation9 + $0xb0] sm:$0xf]
          %v1982 = vld [vmem:[#allocation9 + $0xb4] sm:$0xf]
          %v1983 = vld [vmem:[#allocation9 + $0xb8] sm:$0xf]
          %v1984 = vld [vmem:[#allocation9 + $0xbc] sm:$0xf]
          %v1985 = vld [vmem:[#allocation9 + $0xc0] sm:$0xf]
          %v1986 = vld [vmem:[#allocation9 + $0xc4] sm:$0xf]
          %v1987 = vld [vmem:[#allocation9 + $0xc8] sm:$0xf]
          %v1988 = vld [vmem:[#allocation9 + $0xcc] sm:$0xf]
          %v1989 = vld [vmem:[#allocation9 + $0xd0] sm:$0xf]
          %v1990 = vld [vmem:[#allocation9 + $0xd4] sm:$0xf]
          %v1991 = vld [vmem:[#allocation9 + $0xd8] sm:$0xf]
          %v1992 = vld [vmem:[#allocation9 + $0xdc] sm:$0xf]
          %v1993 = vld [vmem:[#allocation9 + $0xe0] sm:$0xf]
          %v1994 = vld [vmem:[#allocation9 + $0xe4] sm:$0xf]
          %v1995 = vld [vmem:[#allocation9 + $0xe8] sm:$0xf]
          %v1996 = vld [vmem:[#allocation9 + $0xec] sm:$0xf]
          %v1997 = vld [vmem:[#allocation9 + $0xf0] sm:$0xf]
          %v1998 = vld [vmem:[#allocation9 + $0xf4] sm:$0xf]
          %v1999 = vld [vmem:[#allocation9 + $0xf8] sm:$0xf]
          %v2000 = vld [vmem:[#allocation9 + $0xfc] sm:$0xf]
          %v2001 = vpack.c.bf16 %v1936, %v1936
          %v2066 = vunpack.c.l.b16 %v1937
          %v2067 = vunpack.c.l.b16 %v1938
          %v2068 = vunpack.c.l.b16 %v1939
          %v2069 = vunpack.c.l.b16 %v1940
          %v2070 = vunpack.c.l.b16 %v1941
          %v2071 = vunpack.c.l.b16 %v1942
          %v2072 = vunpack.c.l.b16 %v1943
          %v2073 = vunpack.c.l.b16 %v1944
          %v2074 = vunpack.c.l.b16 %v1945
          %v2075 = vunpack.c.l.b16 %v1946
          %v2076 = vunpack.c.l.b16 %v1947
          %v2077 = vunpack.c.l.b16 %v1948
          %v2078 = vunpack.c.l.b16 %v1949
          %v2079 = vunpack.c.l.b16 %v1950
          %v2080 = vunpack.c.l.b16 %v1951
          %v2081 = vunpack.c.l.b16 %v1952
          %v2082 = vunpack.c.l.b16 %v1953
          %v2083 = vunpack.c.l.b16 %v1954
          %v2084 = vunpack.c.l.b16 %v1955
          %v2085 = vunpack.c.l.b16 %v1956
          %v2086 = vunpack.c.l.b16 %v1957
          %v2087 = vunpack.c.l.b16 %v1958
          %v2088 = vunpack.c.l.b16 %v1959
          %v2089 = vunpack.c.l.b16 %v1960
          %v2090 = vunpack.c.l.b16 %v1961
          %v2091 = vunpack.c.l.b16 %v1962
          %v2092 = vunpack.c.l.b16 %v1963
          %v2093 = vunpack.c.l.b16 %v1964
          %v2094 = vunpack.c.l.b16 %v1965
          %v2095 = vunpack.c.l.b16 %v1966
          %v2096 = vunpack.c.l.b16 %v1967
          %v2097 = vunpack.c.l.b16 %v1968
          %v2098 = vunpack.c.l.b16 %v1969
          %v2099 = vunpack.c.l.b16 %v1970
          %v2100 = vunpack.c.l.b16 %v1971
          %v2101 = vunpack.c.l.b16 %v1972
          %v2102 = vunpack.c.l.b16 %v1973
          %v2103 = vunpack.c.l.b16 %v1974
          %v2104 = vunpack.c.l.b16 %v1975
          %v2105 = vunpack.c.l.b16 %v1976
          %v2106 = vunpack.c.l.b16 %v1977
          %v2107 = vunpack.c.l.b16 %v1978
          %v2108 = vunpack.c.l.b16 %v1979
          %v2109 = vunpack.c.l.b16 %v1980
          %v2110 = vunpack.c.l.b16 %v1981
          %v2111 = vunpack.c.l.b16 %v1982
          %v2112 = vunpack.c.l.b16 %v1983
          %v2113 = vunpack.c.l.b16 %v1984
          %v2114 = vunpack.c.l.b16 %v1985
          %v2115 = vunpack.c.l.b16 %v1986
          %v2116 = vunpack.c.l.b16 %v1987
          %v2117 = vunpack.c.l.b16 %v1988
          %v2118 = vunpack.c.l.b16 %v1989
          %v2119 = vunpack.c.l.b16 %v1990
          %v2120 = vunpack.c.l.b16 %v1991
          %v2121 = vunpack.c.l.b16 %v1992
          %v2122 = vunpack.c.l.b16 %v1993
          %v2123 = vunpack.c.l.b16 %v1994
          %v2124 = vunpack.c.l.b16 %v1995
          %v2125 = vunpack.c.l.b16 %v1996
          %v2126 = vunpack.c.l.b16 %v1997
          %v2127 = vunpack.c.l.b16 %v1998
          %v2128 = vunpack.c.l.b16 %v1999
          %v2129 = vunpack.c.l.b16 %v2000
          %v2130 = vpack.c.b16 %v2067, %v2066
          %v2131 = vpack.c.b16 %v2069, %v2068
          %v2132 = vpack.c.b16 %v2071, %v2070
          %v2133 = vpack.c.b16 %v2073, %v2072
          %v2134 = vpack.c.b16 %v2075, %v2074
          %v2135 = vpack.c.b16 %v2077, %v2076
          %v2136 = vpack.c.b16 %v2079, %v2078
          %v2137 = vpack.c.b16 %v2081, %v2080
          %v2138 = vpack.c.b16 %v2083, %v2082
          %v2139 = vpack.c.b16 %v2085, %v2084
          %v2140 = vpack.c.b16 %v2087, %v2086
          %v2141 = vpack.c.b16 %v2089, %v2088
          %v2142 = vpack.c.b16 %v2091, %v2090
          %v2143 = vpack.c.b16 %v2093, %v2092
          %v2144 = vpack.c.b16 %v2095, %v2094
          %v2145 = vpack.c.b16 %v2097, %v2096
          %v2146 = vpack.c.b16 %v2099, %v2098
          %v2147 = vpack.c.b16 %v2101, %v2100
          %v2148 = vpack.c.b16 %v2103, %v2102
          %v2149 = vpack.c.b16 %v2105, %v2104
          %v2150 = vpack.c.b16 %v2107, %v2106
          %v2151 = vpack.c.b16 %v2109, %v2108
          %v2152 = vpack.c.b16 %v2111, %v2110
          %v2153 = vpack.c.b16 %v2113, %v2112
          %v2154 = vpack.c.b16 %v2115, %v2114
          %v2155 = vpack.c.b16 %v2117, %v2116
          %v2156 = vpack.c.b16 %v2119, %v2118
          %v2157 = vpack.c.b16 %v2121, %v2120
          %v2158 = vpack.c.b16 %v2123, %v2122
          %v2159 = vpack.c.b16 %v2125, %v2124
          %v2160 = vpack.c.b16 %v2127, %v2126
          %v2161 = vpack.c.b16 %v2129, %v2128
          %2194 = vmatprep.subr.bf16.mxu0 0
          %2195 = vmatpush1.bf16.xpose.msra.mxu0 %v2130
          %2196 = vmatprep.subr.bf16.mxu0 0
          %2197 = vmatpush1.bf16.xpose.msra.mxu0 %v2131
          %2198 = vmatprep.subr.bf16.mxu0 0
          %2199 = vmatpush1.bf16.xpose.msra.mxu0 %v2132
          %2200 = vmatprep.subr.bf16.mxu0 0
          %2201 = vmatpush1.bf16.xpose.msra.mxu0 %v2133
          %2202 = vmatprep.subr.bf16.mxu0 0
          %2203 = vmatpush1.bf16.xpose.msra.mxu0 %v2134
          %2204 = vmatprep.subr.bf16.mxu0 0
          %2205 = vmatpush1.bf16.xpose.msra.mxu0 %v2135
          %2206 = vmatprep.subr.bf16.mxu0 0
          %2207 = vmatpush1.bf16.xpose.msra.mxu0 %v2136
          %2208 = vmatprep.subr.bf16.mxu0 0
          %2209 = vmatpush1.bf16.xpose.msra.mxu0 %v2137
          %2210 = vmatprep.subr.bf16.mxu0 0
          %2211 = vmatpush1.bf16.xpose.msra.mxu0 %v2138
          %2212 = vmatprep.subr.bf16.mxu0 0
          %2213 = vmatpush1.bf16.xpose.msra.mxu0 %v2139
          %2214 = vmatprep.subr.bf16.mxu0 0
          %2215 = vmatpush1.bf16.xpose.msra.mxu0 %v2140
          %2216 = vmatprep.subr.bf16.mxu0 0
          %2217 = vmatpush1.bf16.xpose.msra.mxu0 %v2141
          %2218 = vmatprep.subr.bf16.mxu0 0
          %2219 = vmatpush1.bf16.xpose.msra.mxu0 %v2142
          %2220 = vmatprep.subr.bf16.mxu0 0
          %2221 = vmatpush1.bf16.xpose.msra.mxu0 %v2143
          %2222 = vmatprep.subr.bf16.mxu0 0
          %2223 = vmatpush1.bf16.xpose.msra.mxu0 %v2144
          %2224 = vmatprep.subr.bf16.mxu0 0
          %2225 = vmatpush1.bf16.xpose.msra.mxu0 %v2145
          %2226 = vmatprep.mubr.bf16.mxu0 0
          %2227 = vmatmul.mubr.bf16.gmra.mrb[0].mxu0 %v2001
          %v2228 = vpop.f32.mrb[0].mxu0
          %v2229 = vadd.f32 0.0, %v2228
          %v2230 = vpop.f32.mrb[0].mxu0
          %v2231 = vadd.f32 0.0, %v2230
          %v2232 = vpop.f32.mrb[0].mxu0
          %v2233 = vpop.f32.mrb[0].mxu0
          %2234 = vdwg.mxu0
          %2235 = vmatprep.subr.bf16.mxu0 0
          %2236 = vmatpush1.bf16.xpose.msra.mxu0 %v2146
          %2237 = vmatprep.subr.bf16.mxu0 0
          %2238 = vmatpush1.bf16.xpose.msra.mxu0 %v2147
          %2239 = vmatprep.subr.bf16.mxu0 0
          %2240 = vmatpush1.bf16.xpose.msra.mxu0 %v2148
          %2241 = vmatprep.subr.bf16.mxu0 0
          %2242 = vmatpush1.bf16.xpose.msra.mxu0 %v2149
          %2243 = vmatprep.subr.bf16.mxu0 0
          %2244 = vmatpush1.bf16.xpose.msra.mxu0 %v2150
          %2245 = vmatprep.subr.bf16.mxu0 0
          %2246 = vmatpush1.bf16.xpose.msra.mxu0 %v2151
          %2247 = vmatprep.subr.bf16.mxu0 0
          %2248 = vmatpush1.bf16.xpose.msra.mxu0 %v2152
          %2249 = vmatprep.subr.bf16.mxu0 0
          %2250 = vmatpush1.bf16.xpose.msra.mxu0 %v2153
          %2251 = vmatprep.subr.bf16.mxu0 0
          %2252 = vmatpush1.bf16.xpose.msra.mxu0 %v2154
          %2253 = vmatprep.subr.bf16.mxu0 0
          %2254 = vmatpush1.bf16.xpose.msra.mxu0 %v2155
          %2255 = vmatprep.subr.bf16.mxu0 0
          %2256 = vmatpush1.bf16.xpose.msra.mxu0 %v2156
          %2257 = vmatprep.subr.bf16.mxu0 0
          %2258 = vmatpush1.bf16.xpose.msra.mxu0 %v2157
          %2259 = vmatprep.subr.bf16.mxu0 0
          %2260 = vmatpush1.bf16.xpose.msra.mxu0 %v2158
          %2261 = vmatprep.subr.bf16.mxu0 0
          %2262 = vmatpush1.bf16.xpose.msra.mxu0 %v2159
          %2263 = vmatprep.subr.bf16.mxu0 0
          %2264 = vmatpush1.bf16.xpose.msra.mxu0 %v2160
          %2265 = vmatprep.subr.bf16.mxu0 0
          %2266 = vmatpush1.bf16.xpose.msra.mxu0 %v2161
          %2267 = vmatprep.mubr.bf16.mxu0 0
          %2268 = vmatmul.mubr.bf16.gmra.mrb[0].mxu0 %v2001
          %v2269 = vpop.f32.mrb[0].mxu0
          %v2270 = vadd.f32 0.0, %v2269
          %v2271 = vpop.f32.mrb[0].mxu0
          %v2272 = vadd.f32 0.0, %v2271
          %v2273 = vpop.f32.mrb[0].mxu0
          %v2274 = vpop.f32.mrb[0].mxu0
          %2275 = vdwg.mxu0
          %2276 = vst [vmem:[%s598] sm:$0xff] %v2229
          %2277 = vst [vmem:[%s598 + $0x8] sm:$0xff] %v2231
          %2278 = vst [vmem:[%s598 + $0x10] sm:$0xff] %v2270
          %2279 = vst [vmem:[%s598 + $0x18] sm:$0xff] %v2272
        $region92: #{transformer_forward.1} parent=67 // pred_fallthru
          _
        %s2280 = sand.u32 %s345, 1
        %s2281 = scalar_lea.sflag [#allocation5], %s2280
        %s2282 = sand.u32 %s345, 1
        %s2283 = smul.addr %s2282, 32
        %s2284 = scalar_lea.vmem [#allocation11], %s2283
        // Predicated region
        $region93: #{transformer_forward.1} parent=67 // pred_check
          %p2285 = pneg %p355
        $region94: #{transformer_forward.1} parent=67 // pred_check_branch
          %2287 = sbr.rel (%p2285) target = $region96
        $region95: #{transformer_forward.1} parent=67 // pred_region
          %s2289 = ssub.s32 512, 512
          %2290 = vsyncadd %s2281, %s2289
          %s2291 = smul.addr %s37, 4
          %s2292 = smul.addr %s2291, 128
          %s2293 = scalar_lea.hbm %s12, %s2292
          %s2295 = sshll.u32 %s2284, 4
          %s2296 = int_to_ptr.vmem [resolvable:$true] %s2295
          %2298 = dma.vmem_to_hbm [thread:$0]  %s2296, 512, %s2293, %s2281
        $region96: #{transformer_forward.1} parent=67 // pred_fallthru
          _
      $region68: #{transformer_forward.1} parent=5 // pred_fallthru
        _
      %p2299 = scmp.le.s32.totalorder 2, %s28
      // Predicated region
      $region97: #{transformer_forward.1} parent=5 // pred_check
        %p2300 = pneg %p2299
      $region98: #{transformer_forward.1} parent=5 // pred_check_branch
        %2302 = sbr.rel (%p2300) target = $region100
      $region99: #{transformer_forward.1} parent=5 // pred_region
        %s2303 = ssub.s32 %s28, 2
        // Predicated region
        $region101: #{transformer_forward.1} parent=99 // pred_check
          %p2304 = pneg %p361
        $region102: #{transformer_forward.1} parent=99 // pred_check_branch
          %2306 = sbr.rel (%p2304) target = $region104
        $region103: #{transformer_forward.1} parent=99 // pred_region
          %s2307 = sand.u32 %s346, 1
          %s2308 = scalar_lea.sflag [#allocation5], %s2307
          %s2309 = sand.u32 %s346, 1
          %s2310 = smul.addr %s2309, 32
          %s2311 = scalar_lea.vmem [#allocation11], %s2310
          %2312 = dma.done %s2308, 512
        $region104: #{transformer_forward.1} parent=99 // pred_fallthru
          _
      $region100: #{transformer_forward.1} parent=5 // pred_fallthru
        _
    $region6: #{transformer_forward.1} parent=1 // loop_footer
      %s32 = sadd.s32 1, %s28
    $region7: #{transformer_forward.1} parent=1 // loop_footer_branch
      %27 = sbr.rel target = $region3
    $region8: #{transformer_forward.1} parent=1 // loop_exit
      _
    %2313 = vsyncpa [#allocation4], 1
    %s2314 = scalar_lea.sflag [#allocation4], 1
    %2315 = vsyncpa %s2314, 1
    %2316 = vsyncpa [#allocation7], 1
    %s2317 = scalar_lea.sflag [#allocation7], 1
    %2318 = vsyncpa %s2317, 1
    %2319 = vsyncpa [#allocation10], 1
    %2320 = vsyncpa [#allocation5], 1
    %s2321 = scalar_lea.sflag [#allocation5], 1
    %2322 = vsyncpa %s2321, 1

</llo_original>
